<compile_context>
chip_gen: v6e
topology: v6e:2x2x1
jax: 0.10.0
libtpu: 0.0.40
codegen_flags: <defaults>
</compile_context>

<pallas_src>
import functools

import jax
import jax.numpy as jnp
from jax.experimental import pallas as pl
from jax.experimental.pallas import tpu as pltpu


def _round_up(x, m):
    return ((x + m - 1) // m) * m


def _lane(c):
    return _round_up(max(int(c), 1), 128)


# ---------------------------------------------------------------------------
# Kernel
# ---------------------------------------------------------------------------
def _encoder_kernel(x_ref,
                    w1_ref, b1_ref, wm_ref,
                    w2a_ref, w2b_ref, b2_ref,
                    w3_ref, b3_ref,
                    w4_ref, c4_ref,
                    w5_ref, c5_ref,
                    out_ref, *, tile_rows, num_points):
    TM, N = tile_rows, num_points
    H = w1_ref.shape[1]
    cdt = w1_ref.dtype                        # MXU operand dtype (bf16 / f32)

    # Input stays in its HBM dtype; cast here instead of in the wrapper.
    x = x_ref[...].astype(cdt)                # (TM*N, C+1); last channel = mask

    # Broadcast the point mask to all H lanes on the MXU (selector matmul):
    # avoids any lane->sublane relayout of the mask and any lane-splat per use.
    mask = jnp.dot(x, wm_ref[...], preferred_element_type=jnp.float32)   # (TM*N, H), {0,1}

    # ---- pre_mlps: Linear(no bias, BN scale folded into W) + shift + ReLU ----
    h1 = jnp.dot(x, w1_ref[...], preferred_element_type=jnp.float32)
    h1 = jnp.maximum(h1 + b1_ref[...], 0.0) * mask                       # (TM*N, H)

    # ---- first max-pool over points (masked points contribute 0, as in ref) ----
    pooled = jnp.max(h1.reshape(TM, N, H), axis=1)                       # (TM, H)

    # ---- mlps layer 1: W2 split -> no concat, pooled term computed once/row ----
    pa = jnp.dot(h1.astype(cdt), w2a_ref[...], preferred_element_type=jnp.float32)
    pb = jnp.dot(pooled.astype(cdt), w2b_ref[...], preferred_element_type=jnp.float32)
    pb = pb + b2_ref[...]                                                # (TM, H)
    h2 = jnp.maximum(pa.reshape(TM, N, H) + pb[:, None, :], 0.0)
    h2 = h2.reshape(TM * N, H)

    # ---- mlps layer 2 ----
    h3 = jnp.dot(h2.astype(cdt), w3_ref[...], preferred_element_type=jnp.float32)
    h3 = jnp.maximum(h3 + b3_ref[...], 0.0) * mask                       # (TM*N, H)

    # ---- second max-pool + per-polyline validity (any valid point) ----
    pooled2 = jnp.max(h3.reshape(TM, N, H), axis=1)                      # (TM, H)
    valid = jnp.max(jnp.max(mask.reshape(TM, N, H), axis=1),
                    axis=1, keepdims=True)                               # (TM, 1), {0,1}

    # ---- out_mlps: Linear+bias+ReLU, Linear+bias (ret_before_act) ----
    o1 = jnp.dot(pooled2.astype(cdt), w4_ref[...], preferred_element_type=jnp.float32)
    o1 = jnp.maximum(o1 + c4_ref[...], 0.0)
    o2 = jnp.dot(o1.astype(cdt), w5_ref[...], preferred_element_type=jnp.float32)
    out_ref[...] = ((o2 + c5_ref[...]) * valid).astype(out_ref.dtype)


# ---------------------------------------------------------------------------
# Parameter preparation (BN folding, W2 split, mask channel / selector)
# ---------------------------------------------------------------------------
def _prepare_params(params, compute_dtype):
    C, H = params["w1"].shape
    f32 = jnp.float32
    w1 = params["w1"] * params["s1"]                                  # (C, H)
    w1 = jnp.concatenate([w1, jnp.zeros((1, H), w1.dtype)], axis=0)   # mask channel -> 0
    wm = jnp.zeros((C + 1, H), f32).at[C, :].set(1.0)                 # mask selector
    w2 = params["w2"] * params["s2"]                                  # (2H, H)
    w3 = params["w3"] * params["s3"]                                  # (H, H)
    return dict(
        w1=w1.astype(compute_dtype),   b1=params["b1"].astype(f32),
        wm=wm.astype(compute_dtype),
        w2a=w2[:H].astype(compute_dtype), w2b=w2[H:].astype(compute_dtype),
        b2=params["b2"].astype(f32),
        w3=w3.astype(compute_dtype),   b3=params["b3"].astype(f32),
        w4=params["w4"].astype(compute_dtype), c4=params["c4"].astype(f32),
        w5=params["w5"].astype(compute_dtype), c5=params["c5"].astype(f32),
    )


def _row_vmem_bytes(n_points, c_aug, hidden, out_c, compute_bytes):
    """Conservative VMEM bytes per polyline row (lane padding to 128 included)."""
    per_point = (
        2 * 4 * _lane(c_aug)                    # x block (f32, double-buffered)
        + compute_bytes * _lane(c_aug)          # in-kernel operand cast of x
        + 5 * 4 * _lane(hidden)                 # mask / h1 / pa / h2 / h3 (f32)
        + 2 * compute_bytes * _lane(hidden)     # operand casts of h1 / h2
    )
    per_row = (
        2 * 4 * _lane(out_c)                    # out block (double-buffered)
        + 8 * 4 * _lane(hidden)                 # pooled / pb / pooled2 / o1 / o2 / valid
    )
    return n_points * per_point + per_row


# ---------------------------------------------------------------------------
# Wrapper
# ---------------------------------------------------------------------------
@functools.partial(jax.jit, static_argnames=("tile_rows", "compute_dtype"))
def pointnet_polyline_encoder(polylines, polylines_mask, params, *,
                              tile_rows=None, compute_dtype=jnp.bfloat16):
    """polylines: (B, P, N, C) float, polylines_mask: (B, P, N) bool -> (B, P, OC)."""
    B, P, N, C = polylines.shape
    BP = B * P
    H = params["w1"].shape[1]
    OC = params["w5"].shape[1]

    p = _prepare_params(params, compute_dtype)

    # Points padded to a sublane multiple so the (TM*N,H) <-> (TM,N,H) reshapes
    # and the axis=1 max-pools need no sublane relayout (padded points mask=0).
    N_pad = _round_up(N, 8)

    # --- per-generation, VMEM-aware tile sizing ------------------------------
    try:
        vmem_cap = int(getattr(pltpu.get_tpu_info(), "vmem_capacity_bytes",
                               64 * 1024 * 1024))
    except Exception:
        vmem_cap = 64 * 1024 * 1024                       # conservative (v7x)
    vmem_limit = min((vmem_cap * 3) // 4, 112 * 1024 * 1024)

    cbytes = jnp.dtype(compute_dtype).itemsize
    weight_bytes = sum(2 * _round_up(a.shape[0], 8) * _lane(a.shape[1])
                       * a.dtype.itemsize for a in p.values())
    row_bytes = _row_vmem_bytes(N_pad, C + 1, H, OC, cbytes)
    budget = int(vmem_limit * 0.8) - weight_bytes
    auto_tile = max(8, min(1024, (budget // row_bytes) // 8 * 8))

    tile = auto_tile if tile_rows is None else max(8, min(_round_up(tile_rows, 8), auto_tile))
    tile = min(tile, _round_up(BP, 8))
    if BP > 8:                       # keep >= 2 grid steps so both v7x TCs get work
        tile = min(tile, _round_up(pl.cdiv(BP, 2), 8))
    BP_pad = _round_up(BP, tile)

    # --- layout prep: the mask rides as the last input channel (inside the
    # (8,128)-padded tiles x already occupies), no dtype cast here. -----------
    x = polylines.reshape(BP, N, C)
    m = polylines_mask.reshape(BP, N).astype(x.dtype)
    x_aug = jnp.concatenate([x, m[:, :, None]], axis=-1)              # (BP, N, C+1)
    if N_pad != N or BP_pad != BP:
        x_aug = jnp.pad(x_aug, ((0, BP_pad - BP), (0, N_pad - N), (0, 0)))
    x_flat = x_aug.reshape(BP_pad * N_pad, C + 1)

    def w_spec(a):
        # Constant block index -> the pipeline skips re-DMA when the window
        # does not move between grid steps (weights fetched once).
        return pl.BlockSpec(a.shape, lambda i: (0, 0))

    kernel = functools.partial(_encoder_kernel, tile_rows=tile, num_points=N_pad)

    out = pl.pallas_call(
        kernel,
        out_shape=jax.ShapeDtypeStruct((BP_pad, OC), jnp.float32),
        grid_spec=pltpu.PrefetchScalarGridSpec(
            num_scalar_prefetch=0,
            grid=(BP_pad // tile,),
            in_specs=[
                pl.BlockSpec((tile * N_pad, C + 1), lambda i: (i, 0)),   # points + mask
                w_spec(p["w1"]), w_spec(p["b1"]), w_spec(p["wm"]),
                w_spec(p["w2a"]), w_spec(p["w2b"]), w_spec(p["b2"]),
                w_spec(p["w3"]), w_spec(p["b3"]),
                w_spec(p["w4"]), w_spec(p["c4"]),
                w_spec(p["w5"]), w_spec(p["c5"]),
            ],
            # OC stays un-padded: full-extent last block dim is legal; skipping
            # the 64->128 zero pad plus the wrapper slice saves a full HBM
            # round trip of the output.
            out_specs=pl.BlockSpec((tile, OC), lambda i: (i, 0)),
        ),
        compiler_params=pltpu.CompilerParams(
            dimension_semantics=("parallel",),
            vmem_limit_bytes=int(vmem_limit)),
    )(x_flat,
      p["w1"], p["b1"], p["wm"],
      p["w2a"], p["w2b"], p["b2"],
      p["w3"], p["b3"],
      p["w4"], p["c4"],
      p["w5"], p["c5"])

    if BP_pad != BP:
        out = out[:BP]
    return out.reshape(B, P, OC)


# ---------------------------------------------------------------------------
# Parameter construction + pure-JAX reference (eval-mode BN)
# ---------------------------------------------------------------------------
def _fold_bn(gamma, beta, mean, var, eps=1e-5):
    scale = gamma / jnp.sqrt(var + eps)
    shift = beta - mean * scale
    return scale[None, :], shift[None, :]


def make_params(key, in_channels, hidden_dim, out_channels):
    ks = jax.random.split(key, 16)
    H = hidden_dim

    def lin(k, cin, cout):
        return jax.random.normal(k, (cin, cout), jnp.float32) * 0.1

    def bn(k, c):
        k1, k2, k3, k4 = jax.random.split(k, 4)
        gamma = 1.0 + 0.1 * jax.random.normal(k1, (c,), jnp.float32)
        beta = 0.1 * jax.random.normal(k2, (c,), jnp.float32)
        mean = 0.05 * jax.random.normal(k3, (c,), jnp.float32)
        var = jax.random.uniform(k4, (c,), jnp.float32, 0.5, 1.5)
        return _fold_bn(gamma, beta, mean, var)

    s1, b1 = bn(ks[1], H)
    s2, b2 = bn(ks[3], H)
    s3, b3 = bn(ks[5], H)
    return dict(
        w1=lin(ks[0], in_channels, H), s1=s1, b1=b1,
        w2=lin(ks[2], 2 * H, H),       s2=s2, b2=b2,
        w3=lin(ks[4], H, H),           s3=s3, b3=b3,
        w4=lin(ks[6], H, H),
        c4=(0.05 * jax.random.normal(ks[7], (1, H), jnp.float32)),
        w5=lin(ks[8], H, out_channels),
        c5=(0.05 * jax.random.normal(ks[9], (1, out_channels), jnp.float32)),
    )


def reference(polylines, polylines_mask, p):
    """Pure-JAX f32 mirror of the PyTorch forward (eval-mode BN)."""
    m = polylines_mask.astype(jnp.float32)[..., None]
    h1 = jnp.maximum(polylines @ p["w1"] * p["s1"] + p["b1"], 0.0) * m
    pooled = h1.max(axis=2, keepdims=True)
    feat = jnp.concatenate([h1, jnp.broadcast_to(pooled, h1.shape)], axis=-1)
    h2 = jnp.maximum(feat @ p["w2"] * p["s2"] + p["b2"], 0.0)
    h3 = jnp.maximum(h2 @ p["w3"] * p["s3"] + p["b3"], 0.0) * m
    pooled2 = h3.max(axis=2)
    valid = (polylines_mask.sum(-1) > 0).astype(jnp.float32)[..., None]
    o1 = jnp.maximum(pooled2 @ p["w4"] + p["c4"], 0.0)
    return (o1 @ p["w5"] + p["c5"]) * valid


if __name__ == "__main__":
    # Small shapes consistent with the module:
    # batch=2, num_polylines=8, points_per_polyline=16, in_channels=8,
    # hidden_dim=32, out_channels=64
    B, P, N, C = 2, 8, 16, 8
    H, OC = 32, 64

    key = jax.random.PRNGKey(0)
    k_x, k_m, k_p = jax.random.split(key, 3)

    polylines = jax.random.normal(k_x, (B, P, N, C), jnp.float32)
    polylines_mask = jax.random.bernoulli(k_m, 0.7, (B, P, N))
    # make one polyline fully invalid to exercise the valid_mask path
    polylines_mask = polylines_mask.at[0, 3, :].set(False)

    params = make_params(k_p, C, H, OC)
    ref = reference(polylines, polylines_mask, params)

    # f32 operand path: tight check
    out_f32 = pointnet_polyline_encoder(polylines, polylines_mask, params,
                                        compute_dtype=jnp.float32)
    out_f32 = jax.block_until_ready(out_f32)
    assert out_f32.shape == (B, P, OC)
    assert jnp.allclose(out_f32, ref, atol=1e-4, rtol=1e-4), "f32 mismatch vs reference"
    assert jnp.all(out_f32[0, 3] == 0.0), "fully-invalid polyline must be zero"

    # bf16 matmul-operand path (default): looser check
    out_bf16 = pointnet_polyline_encoder(polylines, polylines_mask, params)
    out_bf16 = jax.block_until_ready(out_bf16)
    assert out_bf16.shape == (B, P, OC)
    assert jnp.allclose(out_bf16, ref, atol=5e-2, rtol=5e-2), "bf16 mismatch vs reference"
    assert jnp.all(out_bf16[0, 3] == 0.0), "fully-invalid polyline must be zero"

    print("KERNEL_OK")
</pallas_src>

<mosaic_0001>
module attributes {stable_mosaic.version = 11 : i64} {
  func.func @_encoder_kernel(%arg0: i32, %arg1: memref<128x9xf32, #tpu.memory_space<vmem>>, %arg2: memref<9x32xf32, #tpu.memory_space<vmem>>, %arg3: memref<1x32xf32, #tpu.memory_space<vmem>>, %arg4: memref<9x32xf32, #tpu.memory_space<vmem>>, %arg5: memref<32x32xf32, #tpu.memory_space<vmem>>, %arg6: memref<32x32xf32, #tpu.memory_space<vmem>>, %arg7: memref<1x32xf32, #tpu.memory_space<vmem>>, %arg8: memref<32x32xf32, #tpu.memory_space<vmem>>, %arg9: memref<1x32xf32, #tpu.memory_space<vmem>>, %arg10: memref<32x32xf32, #tpu.memory_space<vmem>>, %arg11: memref<1x32xf32, #tpu.memory_space<vmem>>, %arg12: memref<32x64xf32, #tpu.memory_space<vmem>>, %arg13: memref<1x64xf32, #tpu.memory_space<vmem>>, %arg14: memref<8x64xf32, #tpu.memory_space<vmem>>) attributes {dimension_semantics = [#tpu.dimension_semantics<parallel>], iteration_bounds = array<i64: 2>, scalar_prefetch = 0 : i64, scratch_operands = 0 : i64, tpu.core_type = #tpu.core_type<tc>, window_params = [{transform_indices = @transform_0, window_bounds = array<i64: 128, 9>}, {pipeline_mode = #tpu.pipeline_mode<synchronous>, transform_indices = @transform_1, window_bounds = array<i64: 9, 32>}, {pipeline_mode = #tpu.pipeline_mode<synchronous>, transform_indices = @transform_2, window_bounds = array<i64: 1, 32>}, {pipeline_mode = #tpu.pipeline_mode<synchronous>, transform_indices = @transform_3, window_bounds = array<i64: 9, 32>}, {pipeline_mode = #tpu.pipeline_mode<synchronous>, transform_indices = @transform_4, window_bounds = array<i64: 32, 32>}, {pipeline_mode = #tpu.pipeline_mode<synchronous>, transform_indices = @transform_5, window_bounds = array<i64: 32, 32>}, {pipeline_mode = #tpu.pipeline_mode<synchronous>, transform_indices = @transform_6, window_bounds = array<i64: 1, 32>}, {pipeline_mode = #tpu.pipeline_mode<synchronous>, transform_indices = @transform_7, window_bounds = array<i64: 32, 32>}, {pipeline_mode = #tpu.pipeline_mode<synchronous>, transform_indices = @transform_8, window_bounds = array<i64: 1, 32>}, {pipeline_mode = #tpu.pipeline_mode<synchronous>, transform_indices = @transform_9, window_bounds = array<i64: 32, 32>}, {pipeline_mode = #tpu.pipeline_mode<synchronous>, transform_indices = @transform_10, window_bounds = array<i64: 1, 32>}, {pipeline_mode = #tpu.pipeline_mode<synchronous>, transform_indices = @transform_11, window_bounds = array<i64: 32, 64>}, {pipeline_mode = #tpu.pipeline_mode<synchronous>, transform_indices = @transform_12, window_bounds = array<i64: 1, 64>}, {transform_indices = @transform_13, window_bounds = array<i64: 8, 64>}]} {
    %c0 = arith.constant 0 : index
    %c0_0 = arith.constant 0 : index
    %0 = vector.load %arg1[%c0, %c0_0] : memref<128x9xf32, #tpu.memory_space<vmem>>, vector<128x9xf32>
    %c0_1 = arith.constant 0 : index
    %c0_2 = arith.constant 0 : index
    %1 = vector.load %arg4[%c0_1, %c0_2] : memref<9x32xf32, #tpu.memory_space<vmem>>, vector<9x32xf32>
    %cst = arith.constant dense<0.000000e+00> : vector<128x32xf32>
    %2 = tpu.matmul %0, %1, %cst {dimension_numbers = #tpu.dot_dimension_numbers<[1], [0], [0], [1], [0, 0, 1, 1], [], []>} : vector<128x9xf32>, vector<9x32xf32>, vector<128x32xf32> -> vector<128x32xf32>
    %c0_3 = arith.constant 0 : index
    %c0_4 = arith.constant 0 : index
    %3 = vector.load %arg2[%c0_3, %c0_4] : memref<9x32xf32, #tpu.memory_space<vmem>>, vector<9x32xf32>
    %cst_5 = arith.constant dense<0.000000e+00> : vector<128x32xf32>
    %4 = tpu.matmul %0, %3, %cst_5 {dimension_numbers = #tpu.dot_dimension_numbers<[1], [0], [0], [1], [0, 0, 1, 1], [], []>} : vector<128x9xf32>, vector<9x32xf32>, vector<128x32xf32> -> vector<128x32xf32>
    %c0_6 = arith.constant 0 : index
    %c0_7 = arith.constant 0 : index
    %5 = vector.load %arg3[%c0_6, %c0_7] : memref<1x32xf32, #tpu.memory_space<vmem>>, vector<1x32xf32>
    %6 = vector.broadcast %5 : vector<1x32xf32> to vector<128x32xf32>
    %7 = arith.addf %4, %6 : vector<128x32xf32>
    %cst_8 = arith.constant 0.000000e+00 : f32
    %8 = vector.broadcast %cst_8 : f32 to vector<128x32xf32>
    %9 = arith.maximumf %7, %8 : vector<128x32xf32>
    %10 = arith.mulf %9, %2 : vector<128x32xf32>
    %11 = vector.shape_cast %10 : vector<128x32xf32> to vector<8x16x32xf32>
    %cst_9 = arith.constant dense<0xFF800000> : vector<8x32xf32>
    %12 = vector.multi_reduction <maximumf>, %11, %cst_9 [1] : vector<8x16x32xf32> to vector<8x32xf32>
    %c0_10 = arith.constant 0 : index
    %c0_11 = arith.constant 0 : index
    %13 = vector.load %arg5[%c0_10, %c0_11] : memref<32x32xf32, #tpu.memory_space<vmem>>, vector<32x32xf32>
    %cst_12 = arith.constant dense<0.000000e+00> : vector<128x32xf32>
    %14 = tpu.matmul %10, %13, %cst_12 {dimension_numbers = #tpu.dot_dimension_numbers<[1], [0], [0], [1], [0, 0, 1, 1], [], []>} : vector<128x32xf32>, vector<32x32xf32>, vector<128x32xf32> -> vector<128x32xf32>
    %c0_13 = arith.constant 0 : index
    %c0_14 = arith.constant 0 : index
    %15 = vector.load %arg6[%c0_13, %c0_14] : memref<32x32xf32, #tpu.memory_space<vmem>>, vector<32x32xf32>
    %cst_15 = arith.constant dense<0.000000e+00> : vector<8x32xf32>
    %16 = tpu.matmul %12, %15, %cst_15 {dimension_numbers = #tpu.dot_dimension_numbers<[1], [0], [0], [1], [0, 0, 1, 1], [], []>} : vector<8x32xf32>, vector<32x32xf32>, vector<8x32xf32> -> vector<8x32xf32>
    %c0_16 = arith.constant 0 : index
    %c0_17 = arith.constant 0 : index
    %17 = vector.load %arg7[%c0_16, %c0_17] : memref<1x32xf32, #tpu.memory_space<vmem>>, vector<1x32xf32>
    %18 = vector.broadcast %17 : vector<1x32xf32> to vector<8x32xf32>
    %19 = arith.addf %16, %18 : vector<8x32xf32>
    %20 = vector.shape_cast %14 : vector<128x32xf32> to vector<8x16x32xf32>
    %21 = vector.shape_cast %19 : vector<8x32xf32> to vector<8x1x32xf32>
    %22 = vector.broadcast %21 : vector<8x1x32xf32> to vector<8x16x32xf32>
    %23 = arith.addf %20, %22 : vector<8x16x32xf32>
    %cst_18 = arith.constant 0.000000e+00 : f32
    %24 = vector.broadcast %cst_18 : f32 to vector<8x16x32xf32>
    %25 = arith.maximumf %23, %24 : vector<8x16x32xf32>
    %26 = vector.shape_cast %25 : vector<8x16x32xf32> to vector<128x32xf32>
    %c0_19 = arith.constant 0 : index
    %c0_20 = arith.constant 0 : index
    %27 = vector.load %arg8[%c0_19, %c0_20] : memref<32x32xf32, #tpu.memory_space<vmem>>, vector<32x32xf32>
    %cst_21 = arith.constant dense<0.000000e+00> : vector<128x32xf32>
    %28 = tpu.matmul %26, %27, %cst_21 {dimension_numbers = #tpu.dot_dimension_numbers<[1], [0], [0], [1], [0, 0, 1, 1], [], []>} : vector<128x32xf32>, vector<32x32xf32>, vector<128x32xf32> -> vector<128x32xf32>
    %c0_22 = arith.constant 0 : index
    %c0_23 = arith.constant 0 : index
    %29 = vector.load %arg9[%c0_22, %c0_23] : memref<1x32xf32, #tpu.memory_space<vmem>>, vector<1x32xf32>
    %30 = vector.broadcast %29 : vector<1x32xf32> to vector<128x32xf32>
    %31 = arith.addf %28, %30 : vector<128x32xf32>
    %cst_24 = arith.constant 0.000000e+00 : f32
    %32 = vector.broadcast %cst_24 : f32 to vector<128x32xf32>
    %33 = arith.maximumf %31, %32 : vector<128x32xf32>
    %34 = arith.mulf %33, %2 : vector<128x32xf32>
    %35 = vector.shape_cast %34 : vector<128x32xf32> to vector<8x16x32xf32>
    %cst_25 = arith.constant dense<0xFF800000> : vector<8x32xf32>
    %36 = vector.multi_reduction <maximumf>, %35, %cst_25 [1] : vector<8x16x32xf32> to vector<8x32xf32>
    %37 = vector.shape_cast %2 : vector<128x32xf32> to vector<8x16x32xf32>
    %cst_26 = arith.constant dense<0xFF800000> : vector<8x32xf32>
    %38 = vector.multi_reduction <maximumf>, %37, %cst_26 [1] : vector<8x16x32xf32> to vector<8x32xf32>
    %cst_27 = arith.constant dense<0xFF800000> : vector<8xf32>
    %39 = vector.multi_reduction <maximumf>, %38, %cst_27 [1] : vector<8x32xf32> to vector<8xf32>
    %40 = vector.shape_cast %39 : vector<8xf32> to vector<8x1xf32>
    %c0_28 = arith.constant 0 : index
    %c0_29 = arith.constant 0 : index
    %41 = vector.load %arg10[%c0_28, %c0_29] : memref<32x32xf32, #tpu.memory_space<vmem>>, vector<32x32xf32>
    %cst_30 = arith.constant dense<0.000000e+00> : vector<8x32xf32>
    %42 = tpu.matmul %36, %41, %cst_30 {dimension_numbers = #tpu.dot_dimension_numbers<[1], [0], [0], [1], [0, 0, 1, 1], [], []>} : vector<8x32xf32>, vector<32x32xf32>, vector<8x32xf32> -> vector<8x32xf32>
    %c0_31 = arith.constant 0 : index
    %c0_32 = arith.constant 0 : index
    %43 = vector.load %arg11[%c0_31, %c0_32] : memref<1x32xf32, #tpu.memory_space<vmem>>, vector<1x32xf32>
    %44 = vector.broadcast %43 : vector<1x32xf32> to vector<8x32xf32>
    %45 = arith.addf %42, %44 : vector<8x32xf32>
    %cst_33 = arith.constant 0.000000e+00 : f32
    %46 = vector.broadcast %cst_33 : f32 to vector<8x32xf32>
    %47 = arith.maximumf %45, %46 : vector<8x32xf32>
    %c0_34 = arith.constant 0 : index
    %c0_35 = arith.constant 0 : index
    %48 = vector.load %arg12[%c0_34, %c0_35] : memref<32x64xf32, #tpu.memory_space<vmem>>, vector<32x64xf32>
    %cst_36 = arith.constant dense<0.000000e+00> : vector<8x64xf32>
    %49 = tpu.matmul %47, %48, %cst_36 {dimension_numbers = #tpu.dot_dimension_numbers<[1], [0], [0], [1], [0, 0, 1, 1], [], []>} : vector<8x32xf32>, vector<32x64xf32>, vector<8x64xf32> -> vector<8x64xf32>
    %c0_37 = arith.constant 0 : index
    %c0_38 = arith.constant 0 : index
    %50 = vector.load %arg13[%c0_37, %c0_38] : memref<1x64xf32, #tpu.memory_space<vmem>>, vector<1x64xf32>
    %51 = vector.broadcast %50 : vector<1x64xf32> to vector<8x64xf32>
    %52 = arith.addf %49, %51 : vector<8x64xf32>
    %53 = vector.broadcast %40 : vector<8x1xf32> to vector<8x64xf32>
    %54 = arith.mulf %52, %53 : vector<8x64xf32>
    %c0_39 = arith.constant 0 : index
    %c0_40 = arith.constant 0 : index
    %55 = vector.load %arg14[%c0_39, %c0_40] : memref<8x64xf32, #tpu.memory_space<vmem>>, vector<8x64xf32>
    tpu.vector_store %arg14[%c0_39, %c0_40], %54 {strides = array<i32>} : memref<8x64xf32, #tpu.memory_space<vmem>>, vector<8x64xf32>,
    return
  }
  func.func @transform_0(%arg0: i32) -> (i32, i32) {
    %c0_i32 = arith.constant 0 : i32
    %c0_i32_0 = arith.constant 0 : i32
    return %arg0, %c0_i32 : i32, i32
  }
  func.func @transform_1(%arg0: i32) -> (i32, i32) {
    %c0_i32 = arith.constant 0 : i32
    %c0_i32_0 = arith.constant 0 : i32
    %c0_i32_1 = arith.constant 0 : i32
    return %c0_i32, %c0_i32_0 : i32, i32
  }
  func.func @transform_2(%arg0: i32) -> (i32, i32) {
    %c0_i32 = arith.constant 0 : i32
    %c0_i32_0 = arith.constant 0 : i32
    %c0_i32_1 = arith.constant 0 : i32
    return %c0_i32, %c0_i32_0 : i32, i32
  }
  func.func @transform_3(%arg0: i32) -> (i32, i32) {
    %c0_i32 = arith.constant 0 : i32
    %c0_i32_0 = arith.constant 0 : i32
    %c0_i32_1 = arith.constant 0 : i32
    return %c0_i32, %c0_i32_0 : i32, i32
  }
  func.func @transform_4(%arg0: i32) -> (i32, i32) {
    %c0_i32 = arith.constant 0 : i32
    %c0_i32_0 = arith.constant 0 : i32
    %c0_i32_1 = arith.constant 0 : i32
    return %c0_i32, %c0_i32_0 : i32, i32
  }
  func.func @transform_5(%arg0: i32) -> (i32, i32) {
    %c0_i32 = arith.constant 0 : i32
    %c0_i32_0 = arith.constant 0 : i32
    %c0_i32_1 = arith.constant 0 : i32
    return %c0_i32, %c0_i32_0 : i32, i32
  }
  func.func @transform_6(%arg0: i32) -> (i32, i32) {
    %c0_i32 = arith.constant 0 : i32
    %c0_i32_0 = arith.constant 0 : i32
    %c0_i32_1 = arith.constant 0 : i32
    return %c0_i32, %c0_i32_0 : i32, i32
  }
  func.func @transform_7(%arg0: i32) -> (i32, i32) {
    %c0_i32 = arith.constant 0 : i32
    %c0_i32_0 = arith.constant 0 : i32
    %c0_i32_1 = arith.constant 0 : i32
    return %c0_i32, %c0_i32_0 : i32, i32
  }
  func.func @transform_8(%arg0: i32) -> (i32, i32) {
    %c0_i32 = arith.constant 0 : i32
    %c0_i32_0 = arith.constant 0 : i32
    %c0_i32_1 = arith.constant 0 : i32
    return %c0_i32, %c0_i32_0 : i32, i32
  }
  func.func @transform_9(%arg0: i32) -> (i32, i32) {
    %c0_i32 = arith.constant 0 : i32
    %c0_i32_0 = arith.constant 0 : i32
    %c0_i32_1 = arith.constant 0 : i32
    return %c0_i32, %c0_i32_0 : i32, i32
  }
  func.func @transform_10(%arg0: i32) -> (i32, i32) {
    %c0_i32 = arith.constant 0 : i32
    %c0_i32_0 = arith.constant 0 : i32
    %c0_i32_1 = arith.constant 0 : i32
    return %c0_i32, %c0_i32_0 : i32, i32
  }
  func.func @transform_11(%arg0: i32) -> (i32, i32) {
    %c0_i32 = arith.constant 0 : i32
    %c0_i32_0 = arith.constant 0 : i32
    %c0_i32_1 = arith.constant 0 : i32
    return %c0_i32, %c0_i32_0 : i32, i32
  }
  func.func @transform_12(%arg0: i32) -> (i32, i32) {
    %c0_i32 = arith.constant 0 : i32
    %c0_i32_0 = arith.constant 0 : i32
    %c0_i32_1 = arith.constant 0 : i32
    return %c0_i32, %c0_i32_0 : i32, i32
  }
  func.func @transform_13(%arg0: i32) -> (i32, i32) {
    %c0_i32 = arith.constant 0 : i32
    %c0_i32_0 = arith.constant 0 : i32
    return %arg0, %c0_i32 : i32, i32
  }
}

</mosaic_0001>

<llo_original>
// kernel: pointnet_polyline_encoder.1
$region0: #{pointnet_polyline_encoder.1}
  #allocation0 [shape = 'u32[]', space=smem, size = 0x4, offset = 0x4, fixed_abs, tag = 'smem constant byte address 0x4 - core index']
  #allocation1 [shape = 'u32[144,128]{1,0:T(1,128)}', space=vmem, size = 0x12000, scoped, tag = 'internal scratch']
  %s0 = inlined_call_operand.vmem [shape: f32[256,9], index: 0, kind: input, shape index: {}]
  %s1 = inlined_call_operand.vmem [shape: f32[9,32], index: 1, kind: input, shape index: {}]
  %s2 = inlined_call_operand.vmem [shape: f32[1,32], index: 2, kind: input, shape index: {}]
  %s3 = inlined_call_operand.vmem [shape: f32[9,32], index: 3, kind: input, shape index: {}]
  %s4 = inlined_call_operand.vmem [shape: f32[32,32], index: 4, kind: input, shape index: {}]
  %s5 = inlined_call_operand.vmem [shape: f32[32,32], index: 5, kind: input, shape index: {}]
  %s6 = inlined_call_operand.vmem [shape: f32[1,32], index: 6, kind: input, shape index: {}]
  %s7 = inlined_call_operand.vmem [shape: f32[32,32], index: 7, kind: input, shape index: {}]
  %s8 = inlined_call_operand.vmem [shape: f32[1,32], index: 8, kind: input, shape index: {}]
  %s9 = inlined_call_operand.vmem [shape: f32[32,32], index: 9, kind: input, shape index: {}]
  %s10 = inlined_call_operand.vmem [shape: f32[1,32], index: 10, kind: input, shape index: {}]
  %s11 = inlined_call_operand.vmem [shape: f32[32,64], index: 11, kind: input, shape index: {}]
  %s12 = inlined_call_operand.vmem [shape: f32[1,64], index: 12, kind: input, shape index: {}]
  %s13 = inlined_call_operand.hbm [shape: f32[16,64], index: 13, kind: output, shape index: {}]
  %s14 = sld [smem:[#allocation0]]
  $region85: #{pointnet_polyline_encoder.1} parent=0
    _
  %s16 = ssub.s32 1, %s14
  %s17 = scalar_select 0, %s16, %s14
  $region1: #{pointnet_polyline_encoder.1} parent=0
    #allocation2 [shape = 'u8[8192]{0}', space=vmem, size = 0x2000, scoped, tag = 'output window, operand 0']
    #allocation3 [shape = 's32[2]{0}', space=sflag, size = 0x8, scoped, tag = 'scoped memory for pointnet_polyline_encoder.1']
    %18 = vsyncpa [#allocation3], 0
    %s19 = scalar_lea.sflag [#allocation3], 1
    %20 = vsyncpa %s19, 0
    loop: start=0, step=1, limit=4
    $region2: #{pointnet_polyline_encoder.1} parent=1 // loop_pre_header
      _
    $region3: #{pointnet_polyline_encoder.1} parent=1 // loop_header
      %s22 = sphi 0, %s26
      %p23 = scmp.ge.s32.totalorder %s22, 4
      %s32 = sphi 0, %s34
      %s35 = sphi 0, %s32
      %s36 = sphi 0, %s35
      %s52 = sphi 0, %s36
      %s56 = sphi 0, %s56
      %s58 = sphi 0, %s56
      %s59 = sphi 0, %s58
      %s73 = sphi 0, %s59
      %s77 = sphi 0, %s77
      %s79 = sphi 0, %s77
      %s80 = sphi 0, %s79
      %s94 = sphi 0, %s80
      %s98 = sphi 0, %s98
      %s100 = sphi 0, %s98
      %s101 = sphi 0, %s100
      %s115 = sphi 0, %s101
      %s119 = sphi 0, %s119
      %s121 = sphi 0, %s119
      %s122 = sphi 0, %s121
      %s136 = sphi 0, %s122
      %s140 = sphi 0, %s140
      %s142 = sphi 0, %s140
      %s143 = sphi 0, %s142
      %s157 = sphi 0, %s143
      %s161 = sphi 0, %s161
      %s163 = sphi 0, %s161
      %s164 = sphi 0, %s163
      %s178 = sphi 0, %s164
      %s182 = sphi 0, %s182
      %s184 = sphi 0, %s182
      %s185 = sphi 0, %s184
      %s199 = sphi 0, %s185
      %s203 = sphi 0, %s203
      %s205 = sphi 0, %s203
      %s206 = sphi 0, %s205
      %s220 = sphi 0, %s206
      %s224 = sphi 0, %s224
      %s226 = sphi 0, %s224
      %s227 = sphi 0, %s226
      %s241 = sphi 0, %s227
      %s245 = sphi 0, %s245
      %s247 = sphi 0, %s245
      %s248 = sphi 0, %s247
      %s262 = sphi 0, %s248
      %s266 = sphi 0, %s266
      %s268 = sphi 0, %s266
      %s269 = sphi 0, %s268
      %s283 = sphi 0, %s269
      %s287 = sphi 0, %s287
      %s289 = sphi 0, %s287
      %s290 = sphi 0, %s289
      %s304 = sphi 0, %s290
      %s310 = sphi 0, %s312
      %s313 = sphi 0, %s310
      %s314 = sphi 0, %s313
      %s330 = sphi 0, %s314
    $region4: #{pointnet_polyline_encoder.1} parent=1 // loop_header_branch
      %25 = sbr.rel (%p23) target = $region8
    $region5: #{pointnet_polyline_encoder.1} parent=1 // loop_body
      %s27 = ssub.s32 %s22, 1
      %s28 = ssub.s32 %s22, 2
      %s29 = sadd.s32 %s22, 1
      %s30 = ssub.s32 %s22, %s29
      %p31 = scmp.eq.s32.totalorder %s30, 0
      %s33 = sadd.s32 %s32, 1
      %s34 = scalar_select %p31, %s32, %s33
      %p37 = pneg %p31
      %p38 = scmp.eq.s32.totalorder %s22, 1
      %p39 = por %p37, %p38
      %p40 = scmp.ne.s32.totalorder %s32, %s35
      %p41 = scmp.eq.s32.totalorder %s22, 0
      %p42 = por %p40, %p41
      %p43 = scmp.ne.s32.totalorder %s32, %s35
      %p44 = scmp.eq.s32.totalorder %s27, 1
      %p45 = por %p43, %p44
      %p46 = scmp.ne.s32.totalorder %s35, %s36
      %p47 = scmp.eq.s32.totalorder %s27, 0
      %p48 = por %p46, %p47
      %p49 = scmp.ne.s32.totalorder %s35, %s36
      %p50 = scmp.eq.s32.totalorder %s28, 1
      %p51 = por %p49, %p50
      %p53 = scmp.ne.s32.totalorder %s36, %s52
      %p54 = scmp.eq.s32.totalorder %s28, 0
      %p55 = por %p53, %p54
      %s57 = sadd.s32 %s56, 1
      %p60 = scmp.eq.s32.totalorder %s22, 1
      %p61 = scmp.ne.s32.totalorder %s56, %s58
      %p62 = scmp.eq.s32.totalorder %s22, 0
      %p63 = por %p61, %p62
      %p64 = scmp.ne.s32.totalorder %s56, %s58
      %p65 = scmp.eq.s32.totalorder %s27, 1
      %p66 = por %p64, %p65
      %p67 = scmp.ne.s32.totalorder %s58, %s59
      %p68 = scmp.eq.s32.totalorder %s27, 0
      %p69 = por %p67, %p68
      %p70 = scmp.ne.s32.totalorder %s58, %s59
      %p71 = scmp.eq.s32.totalorder %s28, 1
      %p72 = por %p70, %p71
      %p74 = scmp.ne.s32.totalorder %s59, %s73
      %p75 = scmp.eq.s32.totalorder %s28, 0
      %p76 = por %p74, %p75
      %s78 = sadd.s32 %s77, 1
      %p81 = scmp.eq.s32.totalorder %s22, 1
      %p82 = scmp.ne.s32.totalorder %s77, %s79
      %p83 = scmp.eq.s32.totalorder %s22, 0
      %p84 = por %p82, %p83
      %p85 = scmp.ne.s32.totalorder %s77, %s79
      %p86 = scmp.eq.s32.totalorder %s27, 1
      %p87 = por %p85, %p86
      %p88 = scmp.ne.s32.totalorder %s79, %s80
      %p89 = scmp.eq.s32.totalorder %s27, 0
      %p90 = por %p88, %p89
      %p91 = scmp.ne.s32.totalorder %s79, %s80
      %p92 = scmp.eq.s32.totalorder %s28, 1
      %p93 = por %p91, %p92
      %p95 = scmp.ne.s32.totalorder %s80, %s94
      %p96 = scmp.eq.s32.totalorder %s28, 0
      %p97 = por %p95, %p96
      %s99 = sadd.s32 %s98, 1
      %p102 = scmp.eq.s32.totalorder %s22, 1
      %p103 = scmp.ne.s32.totalorder %s98, %s100
      %p104 = scmp.eq.s32.totalorder %s22, 0
      %p105 = por %p103, %p104
      %p106 = scmp.ne.s32.totalorder %s98, %s100
      %p107 = scmp.eq.s32.totalorder %s27, 1
      %p108 = por %p106, %p107
      %p109 = scmp.ne.s32.totalorder %s100, %s101
      %p110 = scmp.eq.s32.totalorder %s27, 0
      %p111 = por %p109, %p110
      %p112 = scmp.ne.s32.totalorder %s100, %s101
      %p113 = scmp.eq.s32.totalorder %s28, 1
      %p114 = por %p112, %p113
      %p116 = scmp.ne.s32.totalorder %s101, %s115
      %p117 = scmp.eq.s32.totalorder %s28, 0
      %p118 = por %p116, %p117
      %s120 = sadd.s32 %s119, 1
      %p123 = scmp.eq.s32.totalorder %s22, 1
      %p124 = scmp.ne.s32.totalorder %s119, %s121
      %p125 = scmp.eq.s32.totalorder %s22, 0
      %p126 = por %p124, %p125
      %p127 = scmp.ne.s32.totalorder %s119, %s121
      %p128 = scmp.eq.s32.totalorder %s27, 1
      %p129 = por %p127, %p128
      %p130 = scmp.ne.s32.totalorder %s121, %s122
      %p131 = scmp.eq.s32.totalorder %s27, 0
      %p132 = por %p130, %p131
      %p133 = scmp.ne.s32.totalorder %s121, %s122
      %p134 = scmp.eq.s32.totalorder %s28, 1
      %p135 = por %p133, %p134
      %p137 = scmp.ne.s32.totalorder %s122, %s136
      %p138 = scmp.eq.s32.totalorder %s28, 0
      %p139 = por %p137, %p138
      %s141 = sadd.s32 %s140, 1
      %p144 = scmp.eq.s32.totalorder %s22, 1
      %p145 = scmp.ne.s32.totalorder %s140, %s142
      %p146 = scmp.eq.s32.totalorder %s22, 0
      %p147 = por %p145, %p146
      %p148 = scmp.ne.s32.totalorder %s140, %s142
      %p149 = scmp.eq.s32.totalorder %s27, 1
      %p150 = por %p148, %p149
      %p151 = scmp.ne.s32.totalorder %s142, %s143
      %p152 = scmp.eq.s32.totalorder %s27, 0
      %p153 = por %p151, %p152
      %p154 = scmp.ne.s32.totalorder %s142, %s143
      %p155 = scmp.eq.s32.totalorder %s28, 1
      %p156 = por %p154, %p155
      %p158 = scmp.ne.s32.totalorder %s143, %s157
      %p159 = scmp.eq.s32.totalorder %s28, 0
      %p160 = por %p158, %p159
      %s162 = sadd.s32 %s161, 1
      %p165 = scmp.eq.s32.totalorder %s22, 1
      %p166 = scmp.ne.s32.totalorder %s161, %s163
      %p167 = scmp.eq.s32.totalorder %s22, 0
      %p168 = por %p166, %p167
      %p169 = scmp.ne.s32.totalorder %s161, %s163
      %p170 = scmp.eq.s32.totalorder %s27, 1
      %p171 = por %p169, %p170
      %p172 = scmp.ne.s32.totalorder %s163, %s164
      %p173 = scmp.eq.s32.totalorder %s27, 0
      %p174 = por %p172, %p173
      %p175 = scmp.ne.s32.totalorder %s163, %s164
      %p176 = scmp.eq.s32.totalorder %s28, 1
      %p177 = por %p175, %p176
      %p179 = scmp.ne.s32.totalorder %s164, %s178
      %p180 = scmp.eq.s32.totalorder %s28, 0
      %p181 = por %p179, %p180
      %s183 = sadd.s32 %s182, 1
      %p186 = scmp.eq.s32.totalorder %s22, 1
      %p187 = scmp.ne.s32.totalorder %s182, %s184
      %p188 = scmp.eq.s32.totalorder %s22, 0
      %p189 = por %p187, %p188
      %p190 = scmp.ne.s32.totalorder %s182, %s184
      %p191 = scmp.eq.s32.totalorder %s27, 1
      %p192 = por %p190, %p191
      %p193 = scmp.ne.s32.totalorder %s184, %s185
      %p194 = scmp.eq.s32.totalorder %s27, 0
      %p195 = por %p193, %p194
      %p196 = scmp.ne.s32.totalorder %s184, %s185
      %p197 = scmp.eq.s32.totalorder %s28, 1
      %p198 = por %p196, %p197
      %p200 = scmp.ne.s32.totalorder %s185, %s199
      %p201 = scmp.eq.s32.totalorder %s28, 0
      %p202 = por %p200, %p201
      %s204 = sadd.s32 %s203, 1
      %p207 = scmp.eq.s32.totalorder %s22, 1
      %p208 = scmp.ne.s32.totalorder %s203, %s205
      %p209 = scmp.eq.s32.totalorder %s22, 0
      %p210 = por %p208, %p209
      %p211 = scmp.ne.s32.totalorder %s203, %s205
      %p212 = scmp.eq.s32.totalorder %s27, 1
      %p213 = por %p211, %p212
      %p214 = scmp.ne.s32.totalorder %s205, %s206
      %p215 = scmp.eq.s32.totalorder %s27, 0
      %p216 = por %p214, %p215
      %p217 = scmp.ne.s32.totalorder %s205, %s206
      %p218 = scmp.eq.s32.totalorder %s28, 1
      %p219 = por %p217, %p218
      %p221 = scmp.ne.s32.totalorder %s206, %s220
      %p222 = scmp.eq.s32.totalorder %s28, 0
      %p223 = por %p221, %p222
      %s225 = sadd.s32 %s224, 1
      %p228 = scmp.eq.s32.totalorder %s22, 1
      %p229 = scmp.ne.s32.totalorder %s224, %s226
      %p230 = scmp.eq.s32.totalorder %s22, 0
      %p231 = por %p229, %p230
      %p232 = scmp.ne.s32.totalorder %s224, %s226
      %p233 = scmp.eq.s32.totalorder %s27, 1
      %p234 = por %p232, %p233
      %p235 = scmp.ne.s32.totalorder %s226, %s227
      %p236 = scmp.eq.s32.totalorder %s27, 0
      %p237 = por %p235, %p236
      %p238 = scmp.ne.s32.totalorder %s226, %s227
      %p239 = scmp.eq.s32.totalorder %s28, 1
      %p240 = por %p238, %p239
      %p242 = scmp.ne.s32.totalorder %s227, %s241
      %p243 = scmp.eq.s32.totalorder %s28, 0
      %p244 = por %p242, %p243
      %s246 = sadd.s32 %s245, 1
      %p249 = scmp.eq.s32.totalorder %s22, 1
      %p250 = scmp.ne.s32.totalorder %s245, %s247
      %p251 = scmp.eq.s32.totalorder %s22, 0
      %p252 = por %p250, %p251
      %p253 = scmp.ne.s32.totalorder %s245, %s247
      %p254 = scmp.eq.s32.totalorder %s27, 1
      %p255 = por %p253, %p254
      %p256 = scmp.ne.s32.totalorder %s247, %s248
      %p257 = scmp.eq.s32.totalorder %s27, 0
      %p258 = por %p256, %p257
      %p259 = scmp.ne.s32.totalorder %s247, %s248
      %p260 = scmp.eq.s32.totalorder %s28, 1
      %p261 = por %p259, %p260
      %p263 = scmp.ne.s32.totalorder %s248, %s262
      %p264 = scmp.eq.s32.totalorder %s28, 0
      %p265 = por %p263, %p264
      %s267 = sadd.s32 %s266, 1
      %p270 = scmp.eq.s32.totalorder %s22, 1
      %p271 = scmp.ne.s32.totalorder %s266, %s268
      %p272 = scmp.eq.s32.totalorder %s22, 0
      %p273 = por %p271, %p272
      %p274 = scmp.ne.s32.totalorder %s266, %s268
      %p275 = scmp.eq.s32.totalorder %s27, 1
      %p276 = por %p274, %p275
      %p277 = scmp.ne.s32.totalorder %s268, %s269
      %p278 = scmp.eq.s32.totalorder %s27, 0
      %p279 = por %p277, %p278
      %p280 = scmp.ne.s32.totalorder %s268, %s269
      %p281 = scmp.eq.s32.totalorder %s28, 1
      %p282 = por %p280, %p281
      %p284 = scmp.ne.s32.totalorder %s269, %s283
      %p285 = scmp.eq.s32.totalorder %s28, 0
      %p286 = por %p284, %p285
      %s288 = sadd.s32 %s287, 1
      %p291 = scmp.eq.s32.totalorder %s22, 1
      %p292 = scmp.ne.s32.totalorder %s287, %s289
      %p293 = scmp.eq.s32.totalorder %s22, 0
      %p294 = por %p292, %p293
      %p295 = scmp.ne.s32.totalorder %s287, %s289
      %p296 = scmp.eq.s32.totalorder %s27, 1
      %p297 = por %p295, %p296
      %p298 = scmp.ne.s32.totalorder %s289, %s290
      %p299 = scmp.eq.s32.totalorder %s27, 0
      %p300 = por %p298, %p299
      %p301 = scmp.ne.s32.totalorder %s289, %s290
      %p302 = scmp.eq.s32.totalorder %s28, 1
      %p303 = por %p301, %p302
      %p305 = scmp.ne.s32.totalorder %s290, %s304
      %p306 = scmp.eq.s32.totalorder %s28, 0
      %p307 = por %p305, %p306
      %s308 = ssub.s32 %s22, %s29
      %p309 = scmp.eq.s32.totalorder %s308, 0
      %s311 = sadd.s32 %s310, 1
      %s312 = scalar_select %p309, %s310, %s311
      %p315 = pneg %p309
      %p316 = scmp.eq.s32.totalorder %s22, 1
      %p317 = por %p315, %p316
      %p318 = scmp.ne.s32.totalorder %s310, %s313
      %p319 = scmp.eq.s32.totalorder %s22, 0
      %p320 = por %p318, %p319
      %p321 = scmp.ne.s32.totalorder %s310, %s313
      %p322 = scmp.eq.s32.totalorder %s27, 1
      %p323 = por %p321, %p322
      %p324 = scmp.ne.s32.totalorder %s313, %s314
      %p325 = scmp.eq.s32.totalorder %s27, 0
      %p326 = por %p324, %p325
      %p327 = scmp.ne.s32.totalorder %s313, %s314
      %p328 = scmp.eq.s32.totalorder %s28, 1
      %p329 = por %p327, %p328
      %p331 = scmp.ne.s32.totalorder %s314, %s330
      %p332 = scmp.eq.s32.totalorder %s28, 0
      %p333 = por %p331, %p332
      %p334 = scmp.le.s32.totalorder 1, %s22
      %p335 = scmp.lt.s32.totalorder %s22, 3
      %p336 = pnand %p334, %p335
      %p337 = pneg %p336
      // Predicated region
      $region9: #{pointnet_polyline_encoder.1} parent=5 // pred_check
        _
      $region10: #{pointnet_polyline_encoder.1} parent=5 // pred_check_branch
        %339 = sbr.rel (%p336) target = $region12
      $region11: #{pointnet_polyline_encoder.1} parent=5 // pred_region
        %s340 = ssub.s32 %s22, 1
        // Predicated region
        $region13: #{pointnet_polyline_encoder.1} parent=11 // pred_check
          %p341 = pneg %p69
        $region14: #{pointnet_polyline_encoder.1} parent=11 // pred_check_branch
          %343 = sbr.rel (%p341) target = $region16
        $region15: #{pointnet_polyline_encoder.1} parent=11 // pred_region
          _
        $region16: #{pointnet_polyline_encoder.1} parent=11 // pred_fallthru
          _
        // Predicated region
        $region17: #{pointnet_polyline_encoder.1} parent=11 // pred_check
          %p344 = pneg %p90
        $region18: #{pointnet_polyline_encoder.1} parent=11 // pred_check_branch
          %346 = sbr.rel (%p344) target = $region20
        $region19: #{pointnet_polyline_encoder.1} parent=11 // pred_region
          _
        $region20: #{pointnet_polyline_encoder.1} parent=11 // pred_fallthru
          _
        // Predicated region
        $region21: #{pointnet_polyline_encoder.1} parent=11 // pred_check
          %p347 = pneg %p111
        $region22: #{pointnet_polyline_encoder.1} parent=11 // pred_check_branch
          %349 = sbr.rel (%p347) target = $region24
        $region23: #{pointnet_polyline_encoder.1} parent=11 // pred_region
          _
        $region24: #{pointnet_polyline_encoder.1} parent=11 // pred_fallthru
          _
        // Predicated region
        $region25: #{pointnet_polyline_encoder.1} parent=11 // pred_check
          %p350 = pneg %p132
        $region26: #{pointnet_polyline_encoder.1} parent=11 // pred_check_branch
          %352 = sbr.rel (%p350) target = $region28
        $region27: #{pointnet_polyline_encoder.1} parent=11 // pred_region
          _
        $region28: #{pointnet_polyline_encoder.1} parent=11 // pred_fallthru
          _
        // Predicated region
        $region29: #{pointnet_polyline_encoder.1} parent=11 // pred_check
          %p353 = pneg %p153
        $region30: #{pointnet_polyline_encoder.1} parent=11 // pred_check_branch
          %355 = sbr.rel (%p353) target = $region32
        $region31: #{pointnet_polyline_encoder.1} parent=11 // pred_region
          _
        $region32: #{pointnet_polyline_encoder.1} parent=11 // pred_fallthru
          _
        // Predicated region
        $region33: #{pointnet_polyline_encoder.1} parent=11 // pred_check
          %p356 = pneg %p174
        $region34: #{pointnet_polyline_encoder.1} parent=11 // pred_check_branch
          %358 = sbr.rel (%p356) target = $region36
        $region35: #{pointnet_polyline_encoder.1} parent=11 // pred_region
          _
        $region36: #{pointnet_polyline_encoder.1} parent=11 // pred_fallthru
          _
        // Predicated region
        $region37: #{pointnet_polyline_encoder.1} parent=11 // pred_check
          %p359 = pneg %p195
        $region38: #{pointnet_polyline_encoder.1} parent=11 // pred_check_branch
          %361 = sbr.rel (%p359) target = $region40
        $region39: #{pointnet_polyline_encoder.1} parent=11 // pred_region
          _
        $region40: #{pointnet_polyline_encoder.1} parent=11 // pred_fallthru
          _
        // Predicated region
        $region41: #{pointnet_polyline_encoder.1} parent=11 // pred_check
          %p362 = pneg %p216
        $region42: #{pointnet_polyline_encoder.1} parent=11 // pred_check_branch
          %364 = sbr.rel (%p362) target = $region44
        $region43: #{pointnet_polyline_encoder.1} parent=11 // pred_region
          _
        $region44: #{pointnet_polyline_encoder.1} parent=11 // pred_fallthru
          _
        // Predicated region
        $region45: #{pointnet_polyline_encoder.1} parent=11 // pred_check
          %p365 = pneg %p237
        $region46: #{pointnet_polyline_encoder.1} parent=11 // pred_check_branch
          %367 = sbr.rel (%p365) target = $region48
        $region47: #{pointnet_polyline_encoder.1} parent=11 // pred_region
          _
        $region48: #{pointnet_polyline_encoder.1} parent=11 // pred_fallthru
          _
        // Predicated region
        $region49: #{pointnet_polyline_encoder.1} parent=11 // pred_check
          %p368 = pneg %p258
        $region50: #{pointnet_polyline_encoder.1} parent=11 // pred_check_branch
          %370 = sbr.rel (%p368) target = $region52
        $region51: #{pointnet_polyline_encoder.1} parent=11 // pred_region
          _
        $region52: #{pointnet_polyline_encoder.1} parent=11 // pred_fallthru
          _
        // Predicated region
        $region53: #{pointnet_polyline_encoder.1} parent=11 // pred_check
          %p371 = pneg %p279
        $region54: #{pointnet_polyline_encoder.1} parent=11 // pred_check_branch
          %373 = sbr.rel (%p371) target = $region56
        $region55: #{pointnet_polyline_encoder.1} parent=11 // pred_region
          _
        $region56: #{pointnet_polyline_encoder.1} parent=11 // pred_fallthru
          _
        // Predicated region
        $region57: #{pointnet_polyline_encoder.1} parent=11 // pred_check
          %p374 = pneg %p300
        $region58: #{pointnet_polyline_encoder.1} parent=11 // pred_check_branch
          %376 = sbr.rel (%p374) target = $region60
        $region59: #{pointnet_polyline_encoder.1} parent=11 // pred_region
          _
        $region60: #{pointnet_polyline_encoder.1} parent=11 // pred_fallthru
          _
      $region12: #{pointnet_polyline_encoder.1} parent=5 // pred_fallthru
        _
      %p377 = scmp.lt.s32.totalorder %s22, 2
      // Predicated region
      $region61: #{pointnet_polyline_encoder.1} parent=5 // pred_check
        %p378 = pneg %p377
      $region62: #{pointnet_polyline_encoder.1} parent=5 // pred_check_branch
        %380 = sbr.rel (%p378) target = $region64
      $region63: #{pointnet_polyline_encoder.1} parent=5 // pred_region
        // Predicated region
        $region65: #{pointnet_polyline_encoder.1} parent=63 // pred_check
          %p381 = pneg %p42
        $region66: #{pointnet_polyline_encoder.1} parent=63 // pred_check_branch
          %383 = sbr.rel (%p381) target = $region68
        $region67: #{pointnet_polyline_encoder.1} parent=63 // pred_region
          %s384 = smul.u32 16, %s22
          %p385 = scmp.lt.s32.totalorder %s384, 31
          %s386 = scalar_select %p385, %s384, 31
          %s387 = smul.addr %s386, 8
          %s388 = scalar_lea.vmem %s0, %s387
          %s389 = smul.u32 16, %s22
        $region68: #{pointnet_polyline_encoder.1} parent=63 // pred_fallthru
          _
      $region64: #{pointnet_polyline_encoder.1} parent=5 // pred_fallthru
        _
      %p390 = scmp.le.s32.totalorder 1, %s22
      %p391 = scmp.lt.s32.totalorder %s22, 3
      %p392 = pnand %p390, %p391
      %p393 = pneg %p392
      // Predicated region
      $region69: #{pointnet_polyline_encoder.1} parent=5 // pred_check
        _
      $region70: #{pointnet_polyline_encoder.1} parent=5 // pred_check_branch
        %395 = sbr.rel (%p392) target = $region72
      $region71: #{pointnet_polyline_encoder.1} parent=5 // pred_region
        %s396 = ssub.s32 %s22, 1
        %s397 = smul.u32 16, %s27
        %p398 = scmp.lt.s32.totalorder %s397, 31
        %s399 = scalar_select %p398, %s397, 31
        %s400 = smul.addr %s399, 8
        %s401 = scalar_lea.vmem %s0, %s400
        %p402 = pneg %p48
        %p403 = pneg %p45
        %p404 = pneg %p69
        %p405 = pneg %p66
        %p406 = pneg %p90
        %p407 = pneg %p87
        %p408 = pneg %p111
        %p409 = pneg %p108
        %p410 = pneg %p132
        %p411 = pneg %p129
        %p412 = pneg %p153
        %p413 = pneg %p150
        %p414 = pneg %p174
        %p415 = pneg %p171
        %p416 = pneg %p195
        %p417 = pneg %p192
        %p418 = pneg %p216
        %p419 = pneg %p213
        %p420 = pneg %p237
        %p421 = pneg %p234
        %p422 = pneg %p258
        %p423 = pneg %p255
        %p424 = pneg %p279
        %p425 = pneg %p276
        %p426 = pneg %p300
        %p427 = pneg %p297
        %p428 = pneg %p326
        %p429 = pneg %p323
        %s430 = sand.u32 %s313, 1
        %s431 = scalar_lea.sflag [#allocation3], %s430
        %s432 = sand.u32 %s313, 1
        %s433 = smul.addr %s432, 8
        %s434 = scalar_lea.vmem [#allocation2], %s433
        %s435 = smul.u32 16, %s27
        %p436 = scmp.lt.s32.totalorder %s435, 31
        %s437 = scalar_select %p436, %s435, 31
        %s438 = smul.addr %s437, 8
        %s439 = scalar_lea.vmem %s0, %s438
        %s440 = smul.u32 16, %s27
        %v441 = vld [vmem:[%s439] sm:$0xff]
        %v442 = vld [vmem:[%s439 + $0x8] sm:$0xff]
        %v443 = vld [vmem:[%s439 + $0x10] sm:$0xff]
        %v444 = vld [vmem:[%s439 + $0x18] sm:$0xff]
        %v445 = vld [vmem:[%s439 + $0x20] sm:$0xff]
        %v446 = vld [vmem:[%s439 + $0x28] sm:$0xff]
        %v447 = vld [vmem:[%s439 + $0x30] sm:$0xff]
        %v448 = vld [vmem:[%s439 + $0x38] sm:$0xff]
        %v449 = vld [vmem:[%s439 + $0x40] sm:$0xff]
        %v450 = vld [vmem:[%s439 + $0x48] sm:$0xff]
        %v451 = vld [vmem:[%s439 + $0x50] sm:$0xff]
        %v452 = vld [vmem:[%s439 + $0x58] sm:$0xff]
        %v453 = vld [vmem:[%s439 + $0x60] sm:$0xff]
        %v454 = vld [vmem:[%s439 + $0x68] sm:$0xff]
        %v455 = vld [vmem:[%s439 + $0x70] sm:$0xff]
        %v456 = vld [vmem:[%s439 + $0x78] sm:$0xff]
        %v457 = vld [vmem:[%s3] sm:$0xff]
        %v458 = vld [vmem:[%s3 + $0x8] sm:$0x1]
        %vm459 = vcmask 72704
        %v461 = vsel %vm459, %v441, 0
        %v464 = vsel %vm459, %v442, 0
        %v467 = vsel %vm459, %v443, 0
        %v470 = vsel %vm459, %v444, 0
        %v473 = vsel %vm459, %v445, 0
        %v476 = vsel %vm459, %v446, 0
        %v479 = vsel %vm459, %v447, 0
        %v482 = vsel %vm459, %v448, 0
        %v485 = vsel %vm459, %v449, 0
        %v488 = vsel %vm459, %v450, 0
        %v491 = vsel %vm459, %v451, 0
        %v494 = vsel %vm459, %v452, 0
        %v497 = vsel %vm459, %v453, 0
        %v500 = vsel %vm459, %v454, 0
        %v503 = vsel %vm459, %v455, 0
        %v506 = vsel %vm459, %v456, 0
        %vm508 = vcmask 1040384
        %v510 = vsel %vm508, %v458, 0
        %512 = vmatprep.subr.mxu0 0.0
        %513 = vmatpush1.msra.mxu0 0.0
        %514 = vmatprep.subr.mxu0 0.0
        %515 = vmatpush1.msra.mxu0 0.0
        %516 = vmatprep.subr.mxu0 0.0
        %517 = vmatpush1.msra.mxu0 0.0
        %518 = vmatprep.subr.mxu0 0.0
        %519 = vmatpush1.msra.mxu0 0.0
        %520 = vmatprep.subr.mxu0 0.0
        %521 = vmatpush1.msra.mxu0 0.0
        %522 = vmatprep.subr.mxu0 0.0
        %523 = vmatpush1.msra.mxu0 0.0
        %524 = vmatprep.subr.mxu0 0.0
        %525 = vmatpush1.msra.mxu0 0.0
        %526 = vmatprep.subr.mxu0 0.0
        %527 = vmatpush1.msra.mxu0 0.0
        %528 = vmatprep.subr.mxu0 0.0
        %529 = vmatpush1.msra.mxu0 0.0
        %530 = vmatprep.subr.mxu0 0.0
        %531 = vmatpush1.msra.mxu0 0.0
        %532 = vmatprep.subr.mxu0 0.0
        %533 = vmatpush1.msra.mxu0 0.0
        %534 = vmatprep.subr.mxu0 0.0
        %535 = vmatpush1.msra.mxu0 0.0
        %536 = vmatprep.subr.mxu0 0.0
        %537 = vmatpush1.msra.mxu0 0.0
        %538 = vmatprep.subr.mxu0 0.0
        %539 = vmatpush1.msra.mxu0 0.0
        %540 = vmatprep.subr.mxu0 0.0
        %541 = vmatpush1.msra.mxu0 %v510
        %542 = vmatprep.subr.mxu0 0.0
        %543 = vmatpush1.msra.mxu0 %v457
        %544 = vmatprep.subr.mxu0 0.0
        %545 = vmatpush2.msra.mxu0 0.0
        %546 = vmatprep.subr.mxu0 0.0
        %547 = vmatpush2.msra.mxu0 0.0
        %548 = vmatprep.subr.mxu0 0.0
        %549 = vmatpush2.msra.mxu0 0.0
        %550 = vmatprep.subr.mxu0 0.0
        %551 = vmatpush2.msra.mxu0 0.0
        %552 = vmatprep.subr.mxu0 0.0
        %553 = vmatpush2.msra.mxu0 0.0
        %554 = vmatprep.subr.mxu0 0.0
        %555 = vmatpush2.msra.mxu0 0.0
        %556 = vmatprep.subr.mxu0 0.0
        %557 = vmatpush2.msra.mxu0 0.0
        %558 = vmatprep.subr.mxu0 0.0
        %559 = vmatpush2.msra.mxu0 0.0
        %560 = vmatprep.subr.mxu0 0.0
        %561 = vmatpush2.msra.mxu0 0.0
        %562 = vmatprep.subr.mxu0 0.0
        %563 = vmatpush2.msra.mxu0 0.0
        %564 = vmatprep.subr.mxu0 0.0
        %565 = vmatpush2.msra.mxu0 0.0
        %566 = vmatprep.subr.mxu0 0.0
        %567 = vmatpush2.msra.mxu0 0.0
        %568 = vmatprep.subr.mxu0 0.0
        %569 = vmatpush2.msra.mxu0 0.0
        %570 = vmatprep.subr.mxu0 0.0
        %571 = vmatpush2.msra.mxu0 0.0
        %572 = vmatprep.subr.mxu0 0.0
        %573 = vmatpush2.msra.mxu0 0.0
        %574 = vmatprep.subr.mxu0 0.0
        %575 = vmatpush2.msra.mxu0 0.0
        %576 = vmatprep.mubr.f32.mxu0 0.0
        %577 = vmatmul.mubr.f32.gmra.mxu0 %v461
        %v578 = vpop.f32.mrf.mxu0
        %v579 = vadd.f32 0.0, %v578
        %v580 = vpop.f32.mrf.mxu0
        %581 = vmatprep.mubr.f32.mxu0 0.0
        %582 = vmatmul.mubr.f32.gmra.mxu0 %v464
        %v583 = vpop.f32.mrf.mxu0
        %v584 = vadd.f32 0.0, %v583
        %v585 = vpop.f32.mrf.mxu0
        %586 = vmatprep.mubr.f32.mxu0 0.0
        %587 = vmatmul.mubr.f32.gmra.mxu0 %v467
        %v588 = vpop.f32.mrf.mxu0
        %v589 = vadd.f32 0.0, %v588
        %v590 = vpop.f32.mrf.mxu0
        %591 = vmatprep.mubr.f32.mxu0 0.0
        %592 = vmatmul.mubr.f32.gmra.mxu0 %v470
        %v593 = vpop.f32.mrf.mxu0
        %v594 = vadd.f32 0.0, %v593
        %v595 = vpop.f32.mrf.mxu0
        %596 = vmatprep.mubr.f32.mxu0 0.0
        %597 = vmatmul.mubr.f32.gmra.mxu0 %v473
        %v598 = vpop.f32.mrf.mxu0
        %v599 = vadd.f32 0.0, %v598
        %v600 = vpop.f32.mrf.mxu0
        %601 = vmatprep.mubr.f32.mxu0 0.0
        %602 = vmatmul.mubr.f32.gmra.mxu0 %v476
        %v603 = vpop.f32.mrf.mxu0
        %v604 = vadd.f32 0.0, %v603
        %v605 = vpop.f32.mrf.mxu0
        %606 = vmatprep.mubr.f32.mxu0 0.0
        %607 = vmatmul.mubr.f32.gmra.mxu0 %v479
        %v608 = vpop.f32.mrf.mxu0
        %v609 = vadd.f32 0.0, %v608
        %v610 = vpop.f32.mrf.mxu0
        %611 = vmatprep.mubr.f32.mxu0 0.0
        %612 = vmatmul.mubr.f32.gmra.mxu0 %v482
        %v613 = vpop.f32.mrf.mxu0
        %v614 = vadd.f32 0.0, %v613
        %v615 = vpop.f32.mrf.mxu0
        %616 = vmatprep.mubr.f32.mxu0 0.0
        %617 = vmatmul.mubr.f32.gmra.mxu0 %v485
        %v618 = vpop.f32.mrf.mxu0
        %v619 = vadd.f32 0.0, %v618
        %v620 = vpop.f32.mrf.mxu0
        %621 = vmatprep.mubr.f32.mxu0 0.0
        %622 = vmatmul.mubr.f32.gmra.mxu0 %v488
        %v623 = vpop.f32.mrf.mxu0
        %v624 = vadd.f32 0.0, %v623
        %v625 = vpop.f32.mrf.mxu0
        %626 = vmatprep.mubr.f32.mxu0 0.0
        %627 = vmatmul.mubr.f32.gmra.mxu0 %v491
        %v628 = vpop.f32.mrf.mxu0
        %v629 = vadd.f32 0.0, %v628
        %v630 = vpop.f32.mrf.mxu0
        %631 = vmatprep.mubr.f32.mxu0 0.0
        %632 = vmatmul.mubr.f32.gmra.mxu0 %v494
        %v633 = vpop.f32.mrf.mxu0
        %v634 = vadd.f32 0.0, %v633
        %v635 = vpop.f32.mrf.mxu0
        %636 = vmatprep.mubr.f32.mxu0 0.0
        %637 = vmatmul.mubr.f32.gmra.mxu0 %v497
        %v638 = vpop.f32.mrf.mxu0
        %v639 = vadd.f32 0.0, %v638
        %v640 = vpop.f32.mrf.mxu0
        %641 = vmatprep.mubr.f32.mxu0 0.0
        %642 = vmatmul.mubr.f32.gmra.mxu0 %v500
        %v643 = vpop.f32.mrf.mxu0
        %v644 = vadd.f32 0.0, %v643
        %v645 = vpop.f32.mrf.mxu0
        %646 = vmatprep.mubr.f32.mxu0 0.0
        %647 = vmatmul.mubr.f32.gmra.mxu0 %v503
        %v648 = vpop.f32.mrf.mxu0
        %v649 = vadd.f32 0.0, %v648
        %v650 = vpop.f32.mrf.mxu0
        %651 = vmatprep.mubr.f32.mxu0 0.0
        %652 = vmatmul.mubr.f32.gmra.mxu0 %v506
        %v653 = vpop.f32.mrf.mxu0
        %v654 = vadd.f32 0.0, %v653
        %v655 = vpop.f32.mrf.mxu0
        %656 = vdwg.mxu0
        %v657 = vld [vmem:[%s1] sm:$0xff]
        %v658 = vld [vmem:[%s1 + $0x8] sm:$0x1]
        %v659 = vld [vmem:[%s2] sm:$0x1]
        %v661 = vlaneseq
        %v662 = vshrl.u32 %v661, 7
        %v663 = vsub.s32 0, %v662
        %v664 = vrot.slane %v659, %v663
        %v667 = vsel %vm508, %v658, 0
        %669 = vmatprep.subr.mxu0 0.0
        %670 = vmatpush1.msra.mxu0 0.0
        %671 = vmatprep.subr.mxu0 0.0
        %672 = vmatpush1.msra.mxu0 0.0
        %673 = vmatprep.subr.mxu0 0.0
        %674 = vmatpush1.msra.mxu0 0.0
        %675 = vmatprep.subr.mxu0 0.0
        %676 = vmatpush1.msra.mxu0 0.0
        %677 = vmatprep.subr.mxu0 0.0
        %678 = vmatpush1.msra.mxu0 0.0
        %679 = vmatprep.subr.mxu0 0.0
        %680 = vmatpush1.msra.mxu0 0.0
        %681 = vmatprep.subr.mxu0 0.0
        %682 = vmatpush1.msra.mxu0 0.0
        %683 = vmatprep.subr.mxu0 0.0
        %684 = vmatpush1.msra.mxu0 0.0
        %685 = vmatprep.subr.mxu0 0.0
        %686 = vmatpush1.msra.mxu0 0.0
        %687 = vmatprep.subr.mxu0 0.0
        %688 = vmatpush1.msra.mxu0 0.0
        %689 = vmatprep.subr.mxu0 0.0
        %690 = vmatpush1.msra.mxu0 0.0
        %691 = vmatprep.subr.mxu0 0.0
        %692 = vmatpush1.msra.mxu0 0.0
        %693 = vmatprep.subr.mxu0 0.0
        %694 = vmatpush1.msra.mxu0 0.0
        %695 = vmatprep.subr.mxu0 0.0
        %696 = vmatpush1.msra.mxu0 0.0
        %697 = vmatprep.subr.mxu0 0.0
        %698 = vmatpush1.msra.mxu0 %v667
        %699 = vmatprep.subr.mxu0 0.0
        %700 = vmatpush1.msra.mxu0 %v657
        %701 = vmatprep.subr.mxu0 0.0
        %702 = vmatpush2.msra.mxu0 0.0
        %703 = vmatprep.subr.mxu0 0.0
        %704 = vmatpush2.msra.mxu0 0.0
        %705 = vmatprep.subr.mxu0 0.0
        %706 = vmatpush2.msra.mxu0 0.0
        %707 = vmatprep.subr.mxu0 0.0
        %708 = vmatpush2.msra.mxu0 0.0
        %709 = vmatprep.subr.mxu0 0.0
        %710 = vmatpush2.msra.mxu0 0.0
        %711 = vmatprep.subr.mxu0 0.0
        %712 = vmatpush2.msra.mxu0 0.0
        %713 = vmatprep.subr.mxu0 0.0
        %714 = vmatpush2.msra.mxu0 0.0
        %715 = vmatprep.subr.mxu0 0.0
        %716 = vmatpush2.msra.mxu0 0.0
        %717 = vmatprep.subr.mxu0 0.0
        %718 = vmatpush2.msra.mxu0 0.0
        %719 = vmatprep.subr.mxu0 0.0
        %720 = vmatpush2.msra.mxu0 0.0
        %721 = vmatprep.subr.mxu0 0.0
        %722 = vmatpush2.msra.mxu0 0.0
        %723 = vmatprep.subr.mxu0 0.0
        %724 = vmatpush2.msra.mxu0 0.0
        %725 = vmatprep.subr.mxu0 0.0
        %726 = vmatpush2.msra.mxu0 0.0
        %727 = vmatprep.subr.mxu0 0.0
        %728 = vmatpush2.msra.mxu0 0.0
        %729 = vmatprep.subr.mxu0 0.0
        %730 = vmatpush2.msra.mxu0 0.0
        %731 = vmatprep.subr.mxu0 0.0
        %732 = vmatpush2.msra.mxu0 0.0
        %733 = vmatprep.mubr.f32.mxu0 0.0
        %734 = vmatmul.mubr.f32.gmra.mxu0 %v461
        %v735 = vpop.f32.mrf.mxu0
        %v736 = vadd.f32 %v664, %v735
        %v737 = vpop.f32.mrf.mxu0
        %738 = vmatprep.mubr.f32.mxu0 0.0
        %739 = vmatmul.mubr.f32.gmra.mxu0 %v464
        %v740 = vpop.f32.mrf.mxu0
        %v741 = vadd.f32 %v664, %v740
        %v742 = vpop.f32.mrf.mxu0
        %743 = vmatprep.mubr.f32.mxu0 0.0
        %744 = vmatmul.mubr.f32.gmra.mxu0 %v467
        %v745 = vpop.f32.mrf.mxu0
        %v746 = vadd.f32 %v664, %v745
        %v747 = vpop.f32.mrf.mxu0
        %748 = vmatprep.mubr.f32.mxu0 0.0
        %749 = vmatmul.mubr.f32.gmra.mxu0 %v470
        %v750 = vpop.f32.mrf.mxu0
        %v751 = vadd.f32 %v664, %v750
        %v752 = vpop.f32.mrf.mxu0
        %753 = vmatprep.mubr.f32.mxu0 0.0
        %754 = vmatmul.mubr.f32.gmra.mxu0 %v473
        %v755 = vpop.f32.mrf.mxu0
        %v756 = vadd.f32 %v664, %v755
        %v757 = vpop.f32.mrf.mxu0
        %758 = vmatprep.mubr.f32.mxu0 0.0
        %759 = vmatmul.mubr.f32.gmra.mxu0 %v476
        %v760 = vpop.f32.mrf.mxu0
        %v761 = vadd.f32 %v664, %v760
        %v762 = vpop.f32.mrf.mxu0
        %763 = vmatprep.mubr.f32.mxu0 0.0
        %764 = vmatmul.mubr.f32.gmra.mxu0 %v479
        %v765 = vpop.f32.mrf.mxu0
        %v766 = vadd.f32 %v664, %v765
        %v767 = vpop.f32.mrf.mxu0
        %768 = vmatprep.mubr.f32.mxu0 0.0
        %769 = vmatmul.mubr.f32.gmra.mxu0 %v482
        %v770 = vpop.f32.mrf.mxu0
        %v771 = vadd.f32 %v664, %v770
        %v772 = vpop.f32.mrf.mxu0
        %773 = vmatprep.mubr.f32.mxu0 0.0
        %774 = vmatmul.mubr.f32.gmra.mxu0 %v485
        %v775 = vpop.f32.mrf.mxu0
        %v776 = vadd.f32 %v664, %v775
        %v777 = vpop.f32.mrf.mxu0
        %778 = vmatprep.mubr.f32.mxu0 0.0
        %779 = vmatmul.mubr.f32.gmra.mxu0 %v488
        %v780 = vpop.f32.mrf.mxu0
        %v781 = vadd.f32 %v664, %v780
        %v782 = vpop.f32.mrf.mxu0
        %783 = vmatprep.mubr.f32.mxu0 0.0
        %784 = vmatmul.mubr.f32.gmra.mxu0 %v491
        %v785 = vpop.f32.mrf.mxu0
        %v786 = vadd.f32 %v664, %v785
        %v787 = vpop.f32.mrf.mxu0
        %788 = vmatprep.mubr.f32.mxu0 0.0
        %789 = vmatmul.mubr.f32.gmra.mxu0 %v494
        %v790 = vpop.f32.mrf.mxu0
        %v791 = vadd.f32 %v664, %v790
        %v792 = vpop.f32.mrf.mxu0
        %793 = vmatprep.mubr.f32.mxu0 0.0
        %794 = vmatmul.mubr.f32.gmra.mxu0 %v497
        %v795 = vpop.f32.mrf.mxu0
        %v796 = vadd.f32 %v664, %v795
        %v797 = vpop.f32.mrf.mxu0
        %798 = vmatprep.mubr.f32.mxu0 0.0
        %799 = vmatmul.mubr.f32.gmra.mxu0 %v500
        %v800 = vpop.f32.mrf.mxu0
        %v801 = vadd.f32 %v664, %v800
        %v802 = vpop.f32.mrf.mxu0
        %803 = vmatprep.mubr.f32.mxu0 0.0
        %804 = vmatmul.mubr.f32.gmra.mxu0 %v503
        %v805 = vpop.f32.mrf.mxu0
        %v806 = vadd.f32 %v664, %v805
        %v807 = vpop.f32.mrf.mxu0
        %808 = vmatprep.mubr.f32.mxu0 0.0
        %809 = vmatmul.mubr.f32.gmra.mxu0 %v506
        %v810 = vpop.f32.mrf.mxu0
        %v811 = vadd.f32 %v664, %v810
        %v812 = vpop.f32.mrf.mxu0
        %813 = vdwg.mxu0
        %v814 = vmax.f32 %v736, 0.0
        %v815 = vmax.f32 %v741, 0.0
        %v816 = vmax.f32 %v746, 0.0
        %v817 = vmax.f32 %v751, 0.0
        %v818 = vmax.f32 %v756, 0.0
        %v819 = vmax.f32 %v761, 0.0
        %v820 = vmax.f32 %v766, 0.0
        %v821 = vmax.f32 %v771, 0.0
        %v822 = vmax.f32 %v776, 0.0
        %v823 = vmax.f32 %v781, 0.0
        %v824 = vmax.f32 %v786, 0.0
        %v825 = vmax.f32 %v791, 0.0
        %v826 = vmax.f32 %v796, 0.0
        %v827 = vmax.f32 %v801, 0.0
        %v828 = vmax.f32 %v806, 0.0
        %v829 = vmax.f32 %v811, 0.0
        %v830 = vmul.f32 %v814, %v579
        %v831 = vmul.f32 %v815, %v584
        %v832 = vmul.f32 %v816, %v589
        %v833 = vmul.f32 %v817, %v594
        %v834 = vmul.f32 %v818, %v599
        %v835 = vmul.f32 %v819, %v604
        %v836 = vmul.f32 %v820, %v609
        %v837 = vmul.f32 %v821, %v614
        %v838 = vmul.f32 %v822, %v619
        %v839 = vmul.f32 %v823, %v624
        %v840 = vmul.f32 %v824, %v629
        %v841 = vmul.f32 %v825, %v634
        %v842 = vmul.f32 %v826, %v639
        %v843 = vmul.f32 %v827, %v644
        %v844 = vmul.f32 %v828, %v649
        %v845 = vmul.f32 %v829, %v654
        %vm846 = vcmask 261120
        %v847 = vsel %vm846, %v830, -inf
        %v848 = vsel %vm846, %v831, -inf
        %v849 = vmax.f32 %v847, %v848
        %v850 = vrot.slane %v849, 4
        %v851 = vmax.f32 %v849, %v850
        %v852 = vrot.slane %v851, 2
        %v853 = vmax.f32 %v851, %v852
        %v854 = vrot.slane %v853, 1
        %v855 = vmax.f32 %v853, %v854
        %v856 = vsel %vm846, %v832, -inf
        %v857 = vsel %vm846, %v833, -inf
        %v858 = vmax.f32 %v856, %v857
        %v859 = vrot.slane %v858, 4
        %v860 = vmax.f32 %v858, %v859
        %v861 = vrot.slane %v860, 2
        %v862 = vmax.f32 %v860, %v861
        %v863 = vrot.slane %v862, 1
        %v864 = vmax.f32 %v862, %v863
        %v865 = vsel %vm846, %v834, -inf
        %v866 = vsel %vm846, %v835, -inf
        %v867 = vmax.f32 %v865, %v866
        %v868 = vrot.slane %v867, 4
        %v869 = vmax.f32 %v867, %v868
        %v870 = vrot.slane %v869, 2
        %v871 = vmax.f32 %v869, %v870
        %v872 = vrot.slane %v871, 1
        %v873 = vmax.f32 %v871, %v872
        %v874 = vsel %vm846, %v836, -inf
        %v875 = vsel %vm846, %v837, -inf
        %v876 = vmax.f32 %v874, %v875
        %v877 = vrot.slane %v876, 4
        %v878 = vmax.f32 %v876, %v877
        %v879 = vrot.slane %v878, 2
        %v880 = vmax.f32 %v878, %v879
        %v881 = vrot.slane %v880, 1
        %v882 = vmax.f32 %v880, %v881
        %v883 = vsel %vm846, %v838, -inf
        %v884 = vsel %vm846, %v839, -inf
        %v885 = vmax.f32 %v883, %v884
        %v886 = vrot.slane %v885, 4
        %v887 = vmax.f32 %v885, %v886
        %v888 = vrot.slane %v887, 2
        %v889 = vmax.f32 %v887, %v888
        %v890 = vrot.slane %v889, 1
        %v891 = vmax.f32 %v889, %v890
        %v892 = vsel %vm846, %v840, -inf
        %v893 = vsel %vm846, %v841, -inf
        %v894 = vmax.f32 %v892, %v893
        %v895 = vrot.slane %v894, 4
        %v896 = vmax.f32 %v894, %v895
        %v897 = vrot.slane %v896, 2
        %v898 = vmax.f32 %v896, %v897
        %v899 = vrot.slane %v898, 1
        %v900 = vmax.f32 %v898, %v899
        %v901 = vsel %vm846, %v842, -inf
        %v902 = vsel %vm846, %v843, -inf
        %v903 = vmax.f32 %v901, %v902
        %v904 = vrot.slane %v903, 4
        %v905 = vmax.f32 %v903, %v904
        %v906 = vrot.slane %v905, 2
        %v907 = vmax.f32 %v905, %v906
        %v908 = vrot.slane %v907, 1
        %v909 = vmax.f32 %v907, %v908
        %v910 = vsel %vm846, %v844, -inf
        %v911 = vsel %vm846, %v845, -inf
        %v912 = vmax.f32 %v910, %v911
        %v913 = vrot.slane %v912, 4
        %v914 = vmax.f32 %v912, %v913
        %v915 = vrot.slane %v914, 2
        %v916 = vmax.f32 %v914, %v915
        %v917 = vrot.slane %v916, 1
        %v918 = vmax.f32 %v916, %v917
        %v919 = vld [vmem:[%s4] sm:$0xff]
        %v920 = vld [vmem:[%s4 + $0x8] sm:$0xff]
        %v921 = vld [vmem:[%s4 + $0x10] sm:$0xff]
        %v922 = vld [vmem:[%s4 + $0x18] sm:$0xff]
        %v924 = vsel %vm846, %v830, 0
        %v927 = vsel %vm846, %v831, 0
        %v930 = vsel %vm846, %v832, 0
        %v933 = vsel %vm846, %v833, 0
        %v936 = vsel %vm846, %v834, 0
        %v939 = vsel %vm846, %v835, 0
        %v942 = vsel %vm846, %v836, 0
        %v945 = vsel %vm846, %v837, 0
        %v948 = vsel %vm846, %v838, 0
        %v951 = vsel %vm846, %v839, 0
        %v954 = vsel %vm846, %v840, 0
        %v957 = vsel %vm846, %v841, 0
        %v960 = vsel %vm846, %v842, 0
        %v963 = vsel %vm846, %v843, 0
        %v966 = vsel %vm846, %v844, 0
        %v969 = vsel %vm846, %v845, 0
        %971 = vmatprep.subr.mxu0 0.0
        %972 = vmatpush1.msra.mxu0 0.0
        %973 = vmatprep.subr.mxu0 0.0
        %974 = vmatpush1.msra.mxu0 0.0
        %975 = vmatprep.subr.mxu0 0.0
        %976 = vmatpush1.msra.mxu0 0.0
        %977 = vmatprep.subr.mxu0 0.0
        %978 = vmatpush1.msra.mxu0 0.0
        %979 = vmatprep.subr.mxu0 0.0
        %980 = vmatpush1.msra.mxu0 0.0
        %981 = vmatprep.subr.mxu0 0.0
        %982 = vmatpush1.msra.mxu0 0.0
        %983 = vmatprep.subr.mxu0 0.0
        %984 = vmatpush1.msra.mxu0 0.0
        %985 = vmatprep.subr.mxu0 0.0
        %986 = vmatpush1.msra.mxu0 0.0
        %987 = vmatprep.subr.mxu0 0.0
        %988 = vmatpush1.msra.mxu0 0.0
        %989 = vmatprep.subr.mxu0 0.0
        %990 = vmatpush1.msra.mxu0 0.0
        %991 = vmatprep.subr.mxu0 0.0
        %992 = vmatpush1.msra.mxu0 0.0
        %993 = vmatprep.subr.mxu0 0.0
        %994 = vmatpush1.msra.mxu0 0.0
        %995 = vmatprep.subr.mxu0 0.0
        %996 = vmatpush1.msra.mxu0 %v922
        %997 = vmatprep.subr.mxu0 0.0
        %998 = vmatpush1.msra.mxu0 %v921
        %999 = vmatprep.subr.mxu0 0.0
        %1000 = vmatpush1.msra.mxu0 %v920
        %1001 = vmatprep.subr.mxu0 0.0
        %1002 = vmatpush1.msra.mxu0 %v919
        %1003 = vmatprep.subr.mxu0 0.0
        %1004 = vmatpush2.msra.mxu0 0.0
        %1005 = vmatprep.subr.mxu0 0.0
        %1006 = vmatpush2.msra.mxu0 0.0
        %1007 = vmatprep.subr.mxu0 0.0
        %1008 = vmatpush2.msra.mxu0 0.0
        %1009 = vmatprep.subr.mxu0 0.0
        %1010 = vmatpush2.msra.mxu0 0.0
        %1011 = vmatprep.subr.mxu0 0.0
        %1012 = vmatpush2.msra.mxu0 0.0
        %1013 = vmatprep.subr.mxu0 0.0
        %1014 = vmatpush2.msra.mxu0 0.0
        %1015 = vmatprep.subr.mxu0 0.0
        %1016 = vmatpush2.msra.mxu0 0.0
        %1017 = vmatprep.subr.mxu0 0.0
        %1018 = vmatpush2.msra.mxu0 0.0
        %1019 = vmatprep.subr.mxu0 0.0
        %1020 = vmatpush2.msra.mxu0 0.0
        %1021 = vmatprep.subr.mxu0 0.0
        %1022 = vmatpush2.msra.mxu0 0.0
        %1023 = vmatprep.subr.mxu0 0.0
        %1024 = vmatpush2.msra.mxu0 0.0
        %1025 = vmatprep.subr.mxu0 0.0
        %1026 = vmatpush2.msra.mxu0 0.0
        %1027 = vmatprep.subr.mxu0 0.0
        %1028 = vmatpush2.msra.mxu0 0.0
        %1029 = vmatprep.subr.mxu0 0.0
        %1030 = vmatpush2.msra.mxu0 0.0
        %1031 = vmatprep.subr.mxu0 0.0
        %1032 = vmatpush2.msra.mxu0 0.0
        %1033 = vmatprep.subr.mxu0 0.0
        %1034 = vmatpush2.msra.mxu0 0.0
        %1035 = vmatprep.mubr.f32.mxu0 0.0
        %1036 = vmatmul.mubr.f32.gmra.mxu0 %v924
        %v1037 = vpop.f32.mrf.mxu0
        %v1038 = vadd.f32 0.0, %v1037
        %v1039 = vpop.f32.mrf.mxu0
        %1040 = vmatprep.mubr.f32.mxu0 0.0
        %1041 = vmatmul.mubr.f32.gmra.mxu0 %v927
        %v1042 = vpop.f32.mrf.mxu0
        %v1043 = vadd.f32 0.0, %v1042
        %v1044 = vpop.f32.mrf.mxu0
        %1045 = vmatprep.mubr.f32.mxu0 0.0
        %1046 = vmatmul.mubr.f32.gmra.mxu0 %v930
        %v1047 = vpop.f32.mrf.mxu0
        %v1048 = vadd.f32 0.0, %v1047
        %v1049 = vpop.f32.mrf.mxu0
        %1050 = vmatprep.mubr.f32.mxu0 0.0
        %1051 = vmatmul.mubr.f32.gmra.mxu0 %v933
        %v1052 = vpop.f32.mrf.mxu0
        %v1053 = vadd.f32 0.0, %v1052
        %v1054 = vpop.f32.mrf.mxu0
        %1055 = vmatprep.mubr.f32.mxu0 0.0
        %1056 = vmatmul.mubr.f32.gmra.mxu0 %v936
        %v1057 = vpop.f32.mrf.mxu0
        %v1058 = vadd.f32 0.0, %v1057
        %v1059 = vpop.f32.mrf.mxu0
        %1060 = vmatprep.mubr.f32.mxu0 0.0
        %1061 = vmatmul.mubr.f32.gmra.mxu0 %v939
        %v1062 = vpop.f32.mrf.mxu0
        %v1063 = vadd.f32 0.0, %v1062
        %v1064 = vpop.f32.mrf.mxu0
        %1065 = vmatprep.mubr.f32.mxu0 0.0
        %1066 = vmatmul.mubr.f32.gmra.mxu0 %v942
        %v1067 = vpop.f32.mrf.mxu0
        %v1068 = vadd.f32 0.0, %v1067
        %v1069 = vpop.f32.mrf.mxu0
        %1070 = vmatprep.mubr.f32.mxu0 0.0
        %1071 = vmatmul.mubr.f32.gmra.mxu0 %v945
        %v1072 = vpop.f32.mrf.mxu0
        %v1073 = vadd.f32 0.0, %v1072
        %v1074 = vpop.f32.mrf.mxu0
        %1075 = vmatprep.mubr.f32.mxu0 0.0
        %1076 = vmatmul.mubr.f32.gmra.mxu0 %v948
        %v1077 = vpop.f32.mrf.mxu0
        %v1078 = vadd.f32 0.0, %v1077
        %v1079 = vpop.f32.mrf.mxu0
        %1080 = vmatprep.mubr.f32.mxu0 0.0
        %1081 = vmatmul.mubr.f32.gmra.mxu0 %v951
        %v1082 = vpop.f32.mrf.mxu0
        %v1083 = vadd.f32 0.0, %v1082
        %v1084 = vpop.f32.mrf.mxu0
        %1085 = vmatprep.mubr.f32.mxu0 0.0
        %1086 = vmatmul.mubr.f32.gmra.mxu0 %v954
        %v1087 = vpop.f32.mrf.mxu0
        %v1088 = vadd.f32 0.0, %v1087
        %v1089 = vpop.f32.mrf.mxu0
        %1090 = vmatprep.mubr.f32.mxu0 0.0
        %1091 = vmatmul.mubr.f32.gmra.mxu0 %v957
        %v1092 = vpop.f32.mrf.mxu0
        %v1093 = vadd.f32 0.0, %v1092
        %v1094 = vpop.f32.mrf.mxu0
        %1095 = vmatprep.mubr.f32.mxu0 0.0
        %1096 = vmatmul.mubr.f32.gmra.mxu0 %v960
        %v1097 = vpop.f32.mrf.mxu0
        %v1098 = vadd.f32 0.0, %v1097
        %v1099 = vpop.f32.mrf.mxu0
        %1100 = vmatprep.mubr.f32.mxu0 0.0
        %1101 = vmatmul.mubr.f32.gmra.mxu0 %v963
        %v1102 = vpop.f32.mrf.mxu0
        %v1103 = vadd.f32 0.0, %v1102
        %v1104 = vpop.f32.mrf.mxu0
        %1105 = vmatprep.mubr.f32.mxu0 0.0
        %1106 = vmatmul.mubr.f32.gmra.mxu0 %v966
        %v1107 = vpop.f32.mrf.mxu0
        %v1108 = vadd.f32 0.0, %v1107
        %v1109 = vpop.f32.mrf.mxu0
        %1110 = vmatprep.mubr.f32.mxu0 0.0
        %1111 = vmatmul.mubr.f32.gmra.mxu0 %v969
        %v1112 = vpop.f32.mrf.mxu0
        %v1113 = vadd.f32 0.0, %v1112
        %v1114 = vpop.f32.mrf.mxu0
        %1115 = vdwg.mxu0
        %v1116 = vld [vmem:[%s5] sm:$0xff]
        %v1117 = vld [vmem:[%s5 + $0x8] sm:$0xff]
        %v1118 = vld [vmem:[%s5 + $0x10] sm:$0xff]
        %v1119 = vld [vmem:[%s5 + $0x18] sm:$0xff]
        %v1120 = vld [vmem:[%s6] sm:$0x1]
        %v1122 = vlaneseq
        %v1123 = vshrl.u32 %v1122, 7
        %v1124 = vsub.s32 0, %v1123
        %v1125 = vrot.slane %v1120, %v1124
        %vm1135 = vcmask 1041409
        %v1136 = vsel %vm1135, %v864, %v855
        %vm1137 = vcmask 1042434
        %v1138 = vsel %vm1137, %v873, %v1136
        %vm1139 = vcmask 1043459
        %v1140 = vsel %vm1139, %v882, %v1138
        %vm1141 = vcmask 1044484
        %v1142 = vsel %vm1141, %v891, %v1140
        %vm1143 = vcmask 1045509
        %v1144 = vsel %vm1143, %v900, %v1142
        %vm1145 = vcmask 1046534
        %v1146 = vsel %vm1145, %v909, %v1144
        %vm1147 = vcmask 1047559
        %v1148 = vsel %vm1147, %v918, %v1146
        %v1149 = vsel %vm846, %v1148, 0
        %1151 = vmatprep.subr.mxu0 0.0
        %1152 = vmatpush1.msra.mxu0 0.0
        %1153 = vmatprep.subr.mxu0 0.0
        %1154 = vmatpush1.msra.mxu0 0.0
        %1155 = vmatprep.subr.mxu0 0.0
        %1156 = vmatpush1.msra.mxu0 0.0
        %1157 = vmatprep.subr.mxu0 0.0
        %1158 = vmatpush1.msra.mxu0 0.0
        %1159 = vmatprep.subr.mxu0 0.0
        %1160 = vmatpush1.msra.mxu0 0.0
        %1161 = vmatprep.subr.mxu0 0.0
        %1162 = vmatpush1.msra.mxu0 0.0
        %1163 = vmatprep.subr.mxu0 0.0
        %1164 = vmatpush1.msra.mxu0 0.0
        %1165 = vmatprep.subr.mxu0 0.0
        %1166 = vmatpush1.msra.mxu0 0.0
        %1167 = vmatprep.subr.mxu0 0.0
        %1168 = vmatpush1.msra.mxu0 0.0
        %1169 = vmatprep.subr.mxu0 0.0
        %1170 = vmatpush1.msra.mxu0 0.0
        %1171 = vmatprep.subr.mxu0 0.0
        %1172 = vmatpush1.msra.mxu0 0.0
        %1173 = vmatprep.subr.mxu0 0.0
        %1174 = vmatpush1.msra.mxu0 0.0
        %1175 = vmatprep.subr.mxu0 0.0
        %1176 = vmatpush1.msra.mxu0 %v1119
        %1177 = vmatprep.subr.mxu0 0.0
        %1178 = vmatpush1.msra.mxu0 %v1118
        %1179 = vmatprep.subr.mxu0 0.0
        %1180 = vmatpush1.msra.mxu0 %v1117
        %1181 = vmatprep.subr.mxu0 0.0
        %1182 = vmatpush1.msra.mxu0 %v1116
        %1183 = vmatprep.subr.mxu0 0.0
        %1184 = vmatpush2.msra.mxu0 0.0
        %1185 = vmatprep.subr.mxu0 0.0
        %1186 = vmatpush2.msra.mxu0 0.0
        %1187 = vmatprep.subr.mxu0 0.0
        %1188 = vmatpush2.msra.mxu0 0.0
        %1189 = vmatprep.subr.mxu0 0.0
        %1190 = vmatpush2.msra.mxu0 0.0
        %1191 = vmatprep.subr.mxu0 0.0
        %1192 = vmatpush2.msra.mxu0 0.0
        %1193 = vmatprep.subr.mxu0 0.0
        %1194 = vmatpush2.msra.mxu0 0.0
        %1195 = vmatprep.subr.mxu0 0.0
        %1196 = vmatpush2.msra.mxu0 0.0
        %1197 = vmatprep.subr.mxu0 0.0
        %1198 = vmatpush2.msra.mxu0 0.0
        %1199 = vmatprep.subr.mxu0 0.0
        %1200 = vmatpush2.msra.mxu0 0.0
        %1201 = vmatprep.subr.mxu0 0.0
        %1202 = vmatpush2.msra.mxu0 0.0
        %1203 = vmatprep.subr.mxu0 0.0
        %1204 = vmatpush2.msra.mxu0 0.0
        %1205 = vmatprep.subr.mxu0 0.0
        %1206 = vmatpush2.msra.mxu0 0.0
        %1207 = vmatprep.subr.mxu0 0.0
        %1208 = vmatpush2.msra.mxu0 0.0
        %1209 = vmatprep.subr.mxu0 0.0
        %1210 = vmatpush2.msra.mxu0 0.0
        %1211 = vmatprep.subr.mxu0 0.0
        %1212 = vmatpush2.msra.mxu0 0.0
        %1213 = vmatprep.subr.mxu0 0.0
        %1214 = vmatpush2.msra.mxu0 0.0
        %1215 = vmatprep.mubr.f32.mxu0 0.0
        %1216 = vmatmul.mubr.f32.gmra.mxu0 %v1149
        %v1217 = vpop.f32.mrf.mxu0
        %v1218 = vadd.f32 %v1125, %v1217
        %v1219 = vpop.f32.mrf.mxu0
        %1220 = vdwg.mxu0
        %v1222 = vcombine.high %v1218, %v1218
        %v1224 = vunpack.c.l.s4 1966171168
        %v1225 = vunpack.c.0.s8 %v1224
        %v1226 = vlaneseq
        %v1227 = vshrl.u32 %v1226, 7
        %v1228 = vsub.s32 %v1225, %v1227
        %v1229 = vrot.slane %v1218, %v1228
        %v1231 = vunpack.c.l.s4 1966171168
        %v1232 = vunpack.c.0.s8 %v1231
        %v1233 = vlaneseq
        %v1234 = vshrl.u32 %v1233, 7
        %v1235 = vsub.s32 %v1232, %v1234
        %v1236 = vrot.slane %v1222, %v1235
        %v1237 = vcombine.high %v1229, %v1229
        %v1238 = vcombine.high %v1236, %v1236
        %v1240 = vunpack.c.l.s4 1966171168
        %v1241 = vunpack.c.0.s8 %v1240
        %v1242 = vlaneseq
        %v1243 = vshrl.u32 %v1242, 7
        %v1244 = vsub.s32 %v1241, %v1243
        %v1245 = vrot.slane %v1229, %v1244
        %v1247 = vunpack.c.l.s4 1966171168
        %v1248 = vunpack.c.0.s8 %v1247
        %v1249 = vlaneseq
        %v1250 = vshrl.u32 %v1249, 7
        %v1251 = vsub.s32 %v1248, %v1250
        %v1252 = vrot.slane %v1236, %v1251
        %v1254 = vunpack.c.l.s4 1966171168
        %v1255 = vunpack.c.0.s8 %v1254
        %v1256 = vlaneseq
        %v1257 = vshrl.u32 %v1256, 7
        %v1258 = vsub.s32 %v1255, %v1257
        %v1259 = vrot.slane %v1237, %v1258
        %v1261 = vunpack.c.l.s4 1966171168
        %v1262 = vunpack.c.0.s8 %v1261
        %v1263 = vlaneseq
        %v1264 = vshrl.u32 %v1263, 7
        %v1265 = vsub.s32 %v1262, %v1264
        %v1266 = vrot.slane %v1238, %v1265
        %v1267 = vcombine.high %v1245, %v1245
        %v1268 = vcombine.high %v1252, %v1252
        %v1269 = vcombine.high %v1259, %v1259
        %v1270 = vcombine.high %v1266, %v1266
        %v1271 = vlaneseq
        %v1272 = vshrl.u32 %v1271, 7
        %v1273 = vsub.s32 0, %v1272
        %v1274 = vrot.slane %v1245, %v1273
        %v1275 = vlaneseq
        %v1276 = vshrl.u32 %v1275, 7
        %v1277 = vsub.s32 0, %v1276
        %v1278 = vrot.slane %v1259, %v1277
        %v1279 = vlaneseq
        %v1280 = vshrl.u32 %v1279, 7
        %v1281 = vsub.s32 0, %v1280
        %v1282 = vrot.slane %v1267, %v1281
        %v1283 = vlaneseq
        %v1284 = vshrl.u32 %v1283, 7
        %v1285 = vsub.s32 0, %v1284
        %v1286 = vrot.slane %v1269, %v1285
        %v1287 = vlaneseq
        %v1288 = vshrl.u32 %v1287, 7
        %v1289 = vsub.s32 0, %v1288
        %v1290 = vrot.slane %v1252, %v1289
        %v1291 = vlaneseq
        %v1292 = vshrl.u32 %v1291, 7
        %v1293 = vsub.s32 0, %v1292
        %v1294 = vrot.slane %v1266, %v1293
        %v1295 = vlaneseq
        %v1296 = vshrl.u32 %v1295, 7
        %v1297 = vsub.s32 0, %v1296
        %v1298 = vrot.slane %v1268, %v1297
        %v1299 = vlaneseq
        %v1300 = vshrl.u32 %v1299, 7
        %v1301 = vsub.s32 0, %v1300
        %v1302 = vrot.slane %v1270, %v1301
        %v1311 = vadd.f32 %v1038, %v1274
        %v1312 = vadd.f32 %v1043, %v1274
        %v1313 = vadd.f32 %v1048, %v1278
        %v1314 = vadd.f32 %v1053, %v1278
        %v1315 = vadd.f32 %v1058, %v1282
        %v1316 = vadd.f32 %v1063, %v1282
        %v1317 = vadd.f32 %v1068, %v1286
        %v1318 = vadd.f32 %v1073, %v1286
        %v1319 = vadd.f32 %v1078, %v1290
        %v1320 = vadd.f32 %v1083, %v1290
        %v1321 = vadd.f32 %v1088, %v1294
        %v1322 = vadd.f32 %v1093, %v1294
        %v1323 = vadd.f32 %v1098, %v1298
        %v1324 = vadd.f32 %v1103, %v1298
        %v1325 = vadd.f32 %v1108, %v1302
        %v1326 = vadd.f32 %v1113, %v1302
        %v1327 = vmax.f32 %v1311, 0.0
        %v1328 = vmax.f32 %v1312, 0.0
        %v1329 = vmax.f32 %v1313, 0.0
        %v1330 = vmax.f32 %v1314, 0.0
        %v1331 = vmax.f32 %v1315, 0.0
        %v1332 = vmax.f32 %v1316, 0.0
        %v1333 = vmax.f32 %v1317, 0.0
        %v1334 = vmax.f32 %v1318, 0.0
        %v1335 = vmax.f32 %v1319, 0.0
        %v1336 = vmax.f32 %v1320, 0.0
        %v1337 = vmax.f32 %v1321, 0.0
        %v1338 = vmax.f32 %v1322, 0.0
        %v1339 = vmax.f32 %v1323, 0.0
        %v1340 = vmax.f32 %v1324, 0.0
        %v1341 = vmax.f32 %v1325, 0.0
        %v1342 = vmax.f32 %v1326, 0.0
        %v1343 = vld [vmem:[%s7] sm:$0xff]
        %v1344 = vld [vmem:[%s7 + $0x8] sm:$0xff]
        %v1345 = vld [vmem:[%s7 + $0x10] sm:$0xff]
        %v1346 = vld [vmem:[%s7 + $0x18] sm:$0xff]
        %v1347 = vld [vmem:[%s8] sm:$0x1]
        %v1349 = vlaneseq
        %v1350 = vshrl.u32 %v1349, 7
        %v1351 = vsub.s32 0, %v1350
        %v1352 = vrot.slane %v1347, %v1351
        %v1355 = vsel %vm846, %v1327, 0
        %v1358 = vsel %vm846, %v1328, 0
        %v1361 = vsel %vm846, %v1329, 0
        %v1364 = vsel %vm846, %v1330, 0
        %v1367 = vsel %vm846, %v1331, 0
        %v1370 = vsel %vm846, %v1332, 0
        %v1373 = vsel %vm846, %v1333, 0
        %v1376 = vsel %vm846, %v1334, 0
        %v1379 = vsel %vm846, %v1335, 0
        %v1382 = vsel %vm846, %v1336, 0
        %v1385 = vsel %vm846, %v1337, 0
        %v1388 = vsel %vm846, %v1338, 0
        %v1391 = vsel %vm846, %v1339, 0
        %v1394 = vsel %vm846, %v1340, 0
        %v1397 = vsel %vm846, %v1341, 0
        %v1400 = vsel %vm846, %v1342, 0
        %1402 = vmatprep.subr.mxu0 0.0
        %1403 = vmatpush1.msra.mxu0 0.0
        %1404 = vmatprep.subr.mxu0 0.0
        %1405 = vmatpush1.msra.mxu0 0.0
        %1406 = vmatprep.subr.mxu0 0.0
        %1407 = vmatpush1.msra.mxu0 0.0
        %1408 = vmatprep.subr.mxu0 0.0
        %1409 = vmatpush1.msra.mxu0 0.0
        %1410 = vmatprep.subr.mxu0 0.0
        %1411 = vmatpush1.msra.mxu0 0.0
        %1412 = vmatprep.subr.mxu0 0.0
        %1413 = vmatpush1.msra.mxu0 0.0
        %1414 = vmatprep.subr.mxu0 0.0
        %1415 = vmatpush1.msra.mxu0 0.0
        %1416 = vmatprep.subr.mxu0 0.0
        %1417 = vmatpush1.msra.mxu0 0.0
        %1418 = vmatprep.subr.mxu0 0.0
        %1419 = vmatpush1.msra.mxu0 0.0
        %1420 = vmatprep.subr.mxu0 0.0
        %1421 = vmatpush1.msra.mxu0 0.0
        %1422 = vmatprep.subr.mxu0 0.0
        %1423 = vmatpush1.msra.mxu0 0.0
        %1424 = vmatprep.subr.mxu0 0.0
        %1425 = vmatpush1.msra.mxu0 0.0
        %1426 = vmatprep.subr.mxu0 0.0
        %1427 = vmatpush1.msra.mxu0 %v1346
        %1428 = vmatprep.subr.mxu0 0.0
        %1429 = vmatpush1.msra.mxu0 %v1345
        %1430 = vmatprep.subr.mxu0 0.0
        %1431 = vmatpush1.msra.mxu0 %v1344
        %1432 = vmatprep.subr.mxu0 0.0
        %1433 = vmatpush1.msra.mxu0 %v1343
        %1434 = vmatprep.subr.mxu0 0.0
        %1435 = vmatpush2.msra.mxu0 0.0
        %1436 = vmatprep.subr.mxu0 0.0
        %1437 = vmatpush2.msra.mxu0 0.0
        %1438 = vmatprep.subr.mxu0 0.0
        %1439 = vmatpush2.msra.mxu0 0.0
        %1440 = vmatprep.subr.mxu0 0.0
        %1441 = vmatpush2.msra.mxu0 0.0
        %1442 = vmatprep.subr.mxu0 0.0
        %1443 = vmatpush2.msra.mxu0 0.0
        %1444 = vmatprep.subr.mxu0 0.0
        %1445 = vmatpush2.msra.mxu0 0.0
        %1446 = vmatprep.subr.mxu0 0.0
        %1447 = vmatpush2.msra.mxu0 0.0
        %1448 = vmatprep.subr.mxu0 0.0
        %1449 = vmatpush2.msra.mxu0 0.0
        %1450 = vmatprep.subr.mxu0 0.0
        %1451 = vmatpush2.msra.mxu0 0.0
        %1452 = vmatprep.subr.mxu0 0.0
        %1453 = vmatpush2.msra.mxu0 0.0
        %1454 = vmatprep.subr.mxu0 0.0
        %1455 = vmatpush2.msra.mxu0 0.0
        %1456 = vmatprep.subr.mxu0 0.0
        %1457 = vmatpush2.msra.mxu0 0.0
        %1458 = vmatprep.subr.mxu0 0.0
        %1459 = vmatpush2.msra.mxu0 0.0
        %1460 = vmatprep.subr.mxu0 0.0
        %1461 = vmatpush2.msra.mxu0 0.0
        %1462 = vmatprep.subr.mxu0 0.0
        %1463 = vmatpush2.msra.mxu0 0.0
        %1464 = vmatprep.subr.mxu0 0.0
        %1465 = vmatpush2.msra.mxu0 0.0
        %1466 = vmatprep.mubr.f32.mxu0 0.0
        %1467 = vmatmul.mubr.f32.gmra.mxu0 %v1355
        %v1468 = vpop.f32.mrf.mxu0
        %v1469 = vadd.f32 %v1352, %v1468
        %v1470 = vpop.f32.mrf.mxu0
        %1471 = vmatprep.mubr.f32.mxu0 0.0
        %1472 = vmatmul.mubr.f32.gmra.mxu0 %v1358
        %v1473 = vpop.f32.mrf.mxu0
        %v1474 = vadd.f32 %v1352, %v1473
        %v1475 = vpop.f32.mrf.mxu0
        %1476 = vmatprep.mubr.f32.mxu0 0.0
        %1477 = vmatmul.mubr.f32.gmra.mxu0 %v1361
        %v1478 = vpop.f32.mrf.mxu0
        %v1479 = vadd.f32 %v1352, %v1478
        %v1480 = vpop.f32.mrf.mxu0
        %1481 = vmatprep.mubr.f32.mxu0 0.0
        %1482 = vmatmul.mubr.f32.gmra.mxu0 %v1364
        %v1483 = vpop.f32.mrf.mxu0
        %v1484 = vadd.f32 %v1352, %v1483
        %v1485 = vpop.f32.mrf.mxu0
        %1486 = vmatprep.mubr.f32.mxu0 0.0
        %1487 = vmatmul.mubr.f32.gmra.mxu0 %v1367
        %v1488 = vpop.f32.mrf.mxu0
        %v1489 = vadd.f32 %v1352, %v1488
        %v1490 = vpop.f32.mrf.mxu0
        %1491 = vmatprep.mubr.f32.mxu0 0.0
        %1492 = vmatmul.mubr.f32.gmra.mxu0 %v1370
        %v1493 = vpop.f32.mrf.mxu0
        %v1494 = vadd.f32 %v1352, %v1493
        %v1495 = vpop.f32.mrf.mxu0
        %1496 = vmatprep.mubr.f32.mxu0 0.0
        %1497 = vmatmul.mubr.f32.gmra.mxu0 %v1373
        %v1498 = vpop.f32.mrf.mxu0
        %v1499 = vadd.f32 %v1352, %v1498
        %v1500 = vpop.f32.mrf.mxu0
        %1501 = vmatprep.mubr.f32.mxu0 0.0
        %1502 = vmatmul.mubr.f32.gmra.mxu0 %v1376
        %v1503 = vpop.f32.mrf.mxu0
        %v1504 = vadd.f32 %v1352, %v1503
        %v1505 = vpop.f32.mrf.mxu0
        %1506 = vmatprep.mubr.f32.mxu0 0.0
        %1507 = vmatmul.mubr.f32.gmra.mxu0 %v1379
        %v1508 = vpop.f32.mrf.mxu0
        %v1509 = vadd.f32 %v1352, %v1508
        %v1510 = vpop.f32.mrf.mxu0
        %1511 = vmatprep.mubr.f32.mxu0 0.0
        %1512 = vmatmul.mubr.f32.gmra.mxu0 %v1382
        %v1513 = vpop.f32.mrf.mxu0
        %v1514 = vadd.f32 %v1352, %v1513
        %v1515 = vpop.f32.mrf.mxu0
        %1516 = vmatprep.mubr.f32.mxu0 0.0
        %1517 = vmatmul.mubr.f32.gmra.mxu0 %v1385
        %v1518 = vpop.f32.mrf.mxu0
        %v1519 = vadd.f32 %v1352, %v1518
        %v1520 = vpop.f32.mrf.mxu0
        %1521 = vmatprep.mubr.f32.mxu0 0.0
        %1522 = vmatmul.mubr.f32.gmra.mxu0 %v1388
        %v1523 = vpop.f32.mrf.mxu0
        %v1524 = vadd.f32 %v1352, %v1523
        %v1525 = vpop.f32.mrf.mxu0
        %1526 = vmatprep.mubr.f32.mxu0 0.0
        %1527 = vmatmul.mubr.f32.gmra.mxu0 %v1391
        %v1528 = vpop.f32.mrf.mxu0
        %v1529 = vadd.f32 %v1352, %v1528
        %v1530 = vpop.f32.mrf.mxu0
        %1531 = vmatprep.mubr.f32.mxu0 0.0
        %1532 = vmatmul.mubr.f32.gmra.mxu0 %v1394
        %v1533 = vpop.f32.mrf.mxu0
        %v1534 = vadd.f32 %v1352, %v1533
        %v1535 = vpop.f32.mrf.mxu0
        %1536 = vmatprep.mubr.f32.mxu0 0.0
        %1537 = vmatmul.mubr.f32.gmra.mxu0 %v1397
        %v1538 = vpop.f32.mrf.mxu0
        %v1539 = vadd.f32 %v1352, %v1538
        %v1540 = vpop.f32.mrf.mxu0
        %1541 = vmatprep.mubr.f32.mxu0 0.0
        %1542 = vmatmul.mubr.f32.gmra.mxu0 %v1400
        %v1543 = vpop.f32.mrf.mxu0
        %v1544 = vadd.f32 %v1352, %v1543
        %v1545 = vpop.f32.mrf.mxu0
        %1546 = vdwg.mxu0
        %v1547 = vmax.f32 %v1469, 0.0
        %v1548 = vmax.f32 %v1474, 0.0
        %v1549 = vmax.f32 %v1479, 0.0
        %v1550 = vmax.f32 %v1484, 0.0
        %v1551 = vmax.f32 %v1489, 0.0
        %v1552 = vmax.f32 %v1494, 0.0
        %v1553 = vmax.f32 %v1499, 0.0
        %v1554 = vmax.f32 %v1504, 0.0
        %v1555 = vmax.f32 %v1509, 0.0
        %v1556 = vmax.f32 %v1514, 0.0
        %v1557 = vmax.f32 %v1519, 0.0
        %v1558 = vmax.f32 %v1524, 0.0
        %v1559 = vmax.f32 %v1529, 0.0
        %v1560 = vmax.f32 %v1534, 0.0
        %v1561 = vmax.f32 %v1539, 0.0
        %v1562 = vmax.f32 %v1544, 0.0
        %v1563 = vmul.f32 %v1547, %v579
        %v1564 = vmul.f32 %v1548, %v584
        %v1565 = vmul.f32 %v1549, %v589
        %v1566 = vmul.f32 %v1550, %v594
        %v1567 = vmul.f32 %v1551, %v599
        %v1568 = vmul.f32 %v1552, %v604
        %v1569 = vmul.f32 %v1553, %v609
        %v1570 = vmul.f32 %v1554, %v614
        %v1571 = vmul.f32 %v1555, %v619
        %v1572 = vmul.f32 %v1556, %v624
        %v1573 = vmul.f32 %v1557, %v629
        %v1574 = vmul.f32 %v1558, %v634
        %v1575 = vmul.f32 %v1559, %v639
        %v1576 = vmul.f32 %v1560, %v644
        %v1577 = vmul.f32 %v1561, %v649
        %v1578 = vmul.f32 %v1562, %v654
        %v1579 = vsel %vm846, %v1563, -inf
        %v1580 = vsel %vm846, %v1564, -inf
        %v1581 = vmax.f32 %v1579, %v1580
        %v1582 = vrot.slane %v1581, 4
        %v1583 = vmax.f32 %v1581, %v1582
        %v1584 = vrot.slane %v1583, 2
        %v1585 = vmax.f32 %v1583, %v1584
        %v1586 = vrot.slane %v1585, 1
        %v1587 = vmax.f32 %v1585, %v1586
        %v1588 = vsel %vm846, %v1565, -inf
        %v1589 = vsel %vm846, %v1566, -inf
        %v1590 = vmax.f32 %v1588, %v1589
        %v1591 = vrot.slane %v1590, 4
        %v1592 = vmax.f32 %v1590, %v1591
        %v1593 = vrot.slane %v1592, 2
        %v1594 = vmax.f32 %v1592, %v1593
        %v1595 = vrot.slane %v1594, 1
        %v1596 = vmax.f32 %v1594, %v1595
        %v1597 = vsel %vm846, %v1567, -inf
        %v1598 = vsel %vm846, %v1568, -inf
        %v1599 = vmax.f32 %v1597, %v1598
        %v1600 = vrot.slane %v1599, 4
        %v1601 = vmax.f32 %v1599, %v1600
        %v1602 = vrot.slane %v1601, 2
        %v1603 = vmax.f32 %v1601, %v1602
        %v1604 = vrot.slane %v1603, 1
        %v1605 = vmax.f32 %v1603, %v1604
        %v1606 = vsel %vm846, %v1569, -inf
        %v1607 = vsel %vm846, %v1570, -inf
        %v1608 = vmax.f32 %v1606, %v1607
        %v1609 = vrot.slane %v1608, 4
        %v1610 = vmax.f32 %v1608, %v1609
        %v1611 = vrot.slane %v1610, 2
        %v1612 = vmax.f32 %v1610, %v1611
        %v1613 = vrot.slane %v1612, 1
        %v1614 = vmax.f32 %v1612, %v1613
        %v1615 = vsel %vm846, %v1571, -inf
        %v1616 = vsel %vm846, %v1572, -inf
        %v1617 = vmax.f32 %v1615, %v1616
        %v1618 = vrot.slane %v1617, 4
        %v1619 = vmax.f32 %v1617, %v1618
        %v1620 = vrot.slane %v1619, 2
        %v1621 = vmax.f32 %v1619, %v1620
        %v1622 = vrot.slane %v1621, 1
        %v1623 = vmax.f32 %v1621, %v1622
        %v1624 = vsel %vm846, %v1573, -inf
        %v1625 = vsel %vm846, %v1574, -inf
        %v1626 = vmax.f32 %v1624, %v1625
        %v1627 = vrot.slane %v1626, 4
        %v1628 = vmax.f32 %v1626, %v1627
        %v1629 = vrot.slane %v1628, 2
        %v1630 = vmax.f32 %v1628, %v1629
        %v1631 = vrot.slane %v1630, 1
        %v1632 = vmax.f32 %v1630, %v1631
        %v1633 = vsel %vm846, %v1575, -inf
        %v1634 = vsel %vm846, %v1576, -inf
        %v1635 = vmax.f32 %v1633, %v1634
        %v1636 = vrot.slane %v1635, 4
        %v1637 = vmax.f32 %v1635, %v1636
        %v1638 = vrot.slane %v1637, 2
        %v1639 = vmax.f32 %v1637, %v1638
        %v1640 = vrot.slane %v1639, 1
        %v1641 = vmax.f32 %v1639, %v1640
        %v1642 = vsel %vm846, %v1577, -inf
        %v1643 = vsel %vm846, %v1578, -inf
        %v1644 = vmax.f32 %v1642, %v1643
        %v1645 = vrot.slane %v1644, 4
        %v1646 = vmax.f32 %v1644, %v1645
        %v1647 = vrot.slane %v1646, 2
        %v1648 = vmax.f32 %v1646, %v1647
        %v1649 = vrot.slane %v1648, 1
        %v1650 = vmax.f32 %v1648, %v1649
        %v1651 = vsel %vm846, %v579, -inf
        %v1652 = vsel %vm846, %v584, -inf
        %v1653 = vmax.f32 %v1651, %v1652
        %v1654 = vrot.slane %v1653, 4
        %v1655 = vmax.f32 %v1653, %v1654
        %v1656 = vrot.slane %v1655, 2
        %v1657 = vmax.f32 %v1655, %v1656
        %v1658 = vrot.slane %v1657, 1
        %v1659 = vmax.f32 %v1657, %v1658
        %v1660 = vsel %vm846, %v589, -inf
        %v1661 = vsel %vm846, %v594, -inf
        %v1662 = vmax.f32 %v1660, %v1661
        %v1663 = vrot.slane %v1662, 4
        %v1664 = vmax.f32 %v1662, %v1663
        %v1665 = vrot.slane %v1664, 2
        %v1666 = vmax.f32 %v1664, %v1665
        %v1667 = vrot.slane %v1666, 1
        %v1668 = vmax.f32 %v1666, %v1667
        %v1669 = vsel %vm846, %v599, -inf
        %v1670 = vsel %vm846, %v604, -inf
        %v1671 = vmax.f32 %v1669, %v1670
        %v1672 = vrot.slane %v1671, 4
        %v1673 = vmax.f32 %v1671, %v1672
        %v1674 = vrot.slane %v1673, 2
        %v1675 = vmax.f32 %v1673, %v1674
        %v1676 = vrot.slane %v1675, 1
        %v1677 = vmax.f32 %v1675, %v1676
        %v1678 = vsel %vm846, %v609, -inf
        %v1679 = vsel %vm846, %v614, -inf
        %v1680 = vmax.f32 %v1678, %v1679
        %v1681 = vrot.slane %v1680, 4
        %v1682 = vmax.f32 %v1680, %v1681
        %v1683 = vrot.slane %v1682, 2
        %v1684 = vmax.f32 %v1682, %v1683
        %v1685 = vrot.slane %v1684, 1
        %v1686 = vmax.f32 %v1684, %v1685
        %v1687 = vsel %vm846, %v619, -inf
        %v1688 = vsel %vm846, %v624, -inf
        %v1689 = vmax.f32 %v1687, %v1688
        %v1690 = vrot.slane %v1689, 4
        %v1691 = vmax.f32 %v1689, %v1690
        %v1692 = vrot.slane %v1691, 2
        %v1693 = vmax.f32 %v1691, %v1692
        %v1694 = vrot.slane %v1693, 1
        %v1695 = vmax.f32 %v1693, %v1694
        %v1696 = vsel %vm846, %v629, -inf
        %v1697 = vsel %vm846, %v634, -inf
        %v1698 = vmax.f32 %v1696, %v1697
        %v1699 = vrot.slane %v1698, 4
        %v1700 = vmax.f32 %v1698, %v1699
        %v1701 = vrot.slane %v1700, 2
        %v1702 = vmax.f32 %v1700, %v1701
        %v1703 = vrot.slane %v1702, 1
        %v1704 = vmax.f32 %v1702, %v1703
        %v1705 = vsel %vm846, %v639, -inf
        %v1706 = vsel %vm846, %v644, -inf
        %v1707 = vmax.f32 %v1705, %v1706
        %v1708 = vrot.slane %v1707, 4
        %v1709 = vmax.f32 %v1707, %v1708
        %v1710 = vrot.slane %v1709, 2
        %v1711 = vmax.f32 %v1709, %v1710
        %v1712 = vrot.slane %v1711, 1
        %v1713 = vmax.f32 %v1711, %v1712
        %v1714 = vsel %vm846, %v649, -inf
        %v1715 = vsel %vm846, %v654, -inf
        %v1716 = vmax.f32 %v1714, %v1715
        %v1717 = vrot.slane %v1716, 4
        %v1718 = vmax.f32 %v1716, %v1717
        %v1719 = vrot.slane %v1718, 2
        %v1720 = vmax.f32 %v1718, %v1719
        %v1721 = vrot.slane %v1720, 1
        %v1722 = vmax.f32 %v1720, %v1721
        %v1731 = vsel %vm1135, %v1668, %v1659
        %v1732 = vsel %vm1137, %v1677, %v1731
        %v1733 = vsel %vm1139, %v1686, %v1732
        %v1734 = vsel %vm1141, %v1695, %v1733
        %v1735 = vsel %vm1143, %v1704, %v1734
        %v1736 = vsel %vm1145, %v1713, %v1735
        %v1737 = vsel %vm1147, %v1722, %v1736
        %v1739 = vsel %vm846, %v1737, -inf
        %1740 = vmax.xlane.f32.xlu0 %v1739
        %v1741 = vpop.xlane.xlu0 %1740
        %v1742 = vld [vmem:[%s9] sm:$0xff]
        %v1743 = vld [vmem:[%s9 + $0x8] sm:$0xff]
        %v1744 = vld [vmem:[%s9 + $0x10] sm:$0xff]
        %v1745 = vld [vmem:[%s9 + $0x18] sm:$0xff]
        %v1746 = vld [vmem:[%s10] sm:$0x1]
        %v1748 = vlaneseq
        %v1749 = vshrl.u32 %v1748, 7
        %v1750 = vsub.s32 0, %v1749
        %v1751 = vrot.slane %v1746, %v1750
        %v1761 = vsel %vm1135, %v1596, %v1587
        %v1762 = vsel %vm1137, %v1605, %v1761
        %v1763 = vsel %vm1139, %v1614, %v1762
        %v1764 = vsel %vm1141, %v1623, %v1763
        %v1765 = vsel %vm1143, %v1632, %v1764
        %v1766 = vsel %vm1145, %v1641, %v1765
        %v1767 = vsel %vm1147, %v1650, %v1766
        %v1768 = vsel %vm846, %v1767, 0
        %1770 = vmatprep.subr.mxu0 0.0
        %1771 = vmatpush1.msra.mxu0 0.0
        %1772 = vmatprep.subr.mxu0 0.0
        %1773 = vmatpush1.msra.mxu0 0.0
        %1774 = vmatprep.subr.mxu0 0.0
        %1775 = vmatpush1.msra.mxu0 0.0
        %1776 = vmatprep.subr.mxu0 0.0
        %1777 = vmatpush1.msra.mxu0 0.0
        %1778 = vmatprep.subr.mxu0 0.0
        %1779 = vmatpush1.msra.mxu0 0.0
        %1780 = vmatprep.subr.mxu0 0.0
        %1781 = vmatpush1.msra.mxu0 0.0
        %1782 = vmatprep.subr.mxu0 0.0
        %1783 = vmatpush1.msra.mxu0 0.0
        %1784 = vmatprep.subr.mxu0 0.0
        %1785 = vmatpush1.msra.mxu0 0.0
        %1786 = vmatprep.subr.mxu0 0.0
        %1787 = vmatpush1.msra.mxu0 0.0
        %1788 = vmatprep.subr.mxu0 0.0
        %1789 = vmatpush1.msra.mxu0 0.0
        %1790 = vmatprep.subr.mxu0 0.0
        %1791 = vmatpush1.msra.mxu0 0.0
        %1792 = vmatprep.subr.mxu0 0.0
        %1793 = vmatpush1.msra.mxu0 0.0
        %1794 = vmatprep.subr.mxu0 0.0
        %1795 = vmatpush1.msra.mxu0 %v1745
        %1796 = vmatprep.subr.mxu0 0.0
        %1797 = vmatpush1.msra.mxu0 %v1744
        %1798 = vmatprep.subr.mxu0 0.0
        %1799 = vmatpush1.msra.mxu0 %v1743
        %1800 = vmatprep.subr.mxu0 0.0
        %1801 = vmatpush1.msra.mxu0 %v1742
        %1802 = vmatprep.subr.mxu0 0.0
        %1803 = vmatpush2.msra.mxu0 0.0
        %1804 = vmatprep.subr.mxu0 0.0
        %1805 = vmatpush2.msra.mxu0 0.0
        %1806 = vmatprep.subr.mxu0 0.0
        %1807 = vmatpush2.msra.mxu0 0.0
        %1808 = vmatprep.subr.mxu0 0.0
        %1809 = vmatpush2.msra.mxu0 0.0
        %1810 = vmatprep.subr.mxu0 0.0
        %1811 = vmatpush2.msra.mxu0 0.0
        %1812 = vmatprep.subr.mxu0 0.0
        %1813 = vmatpush2.msra.mxu0 0.0
        %1814 = vmatprep.subr.mxu0 0.0
        %1815 = vmatpush2.msra.mxu0 0.0
        %1816 = vmatprep.subr.mxu0 0.0
        %1817 = vmatpush2.msra.mxu0 0.0
        %1818 = vmatprep.subr.mxu0 0.0
        %1819 = vmatpush2.msra.mxu0 0.0
        %1820 = vmatprep.subr.mxu0 0.0
        %1821 = vmatpush2.msra.mxu0 0.0
        %1822 = vmatprep.subr.mxu0 0.0
        %1823 = vmatpush2.msra.mxu0 0.0
        %1824 = vmatprep.subr.mxu0 0.0
        %1825 = vmatpush2.msra.mxu0 0.0
        %1826 = vmatprep.subr.mxu0 0.0
        %1827 = vmatpush2.msra.mxu0 0.0
        %1828 = vmatprep.subr.mxu0 0.0
        %1829 = vmatpush2.msra.mxu0 0.0
        %1830 = vmatprep.subr.mxu0 0.0
        %1831 = vmatpush2.msra.mxu0 0.0
        %1832 = vmatprep.subr.mxu0 0.0
        %1833 = vmatpush2.msra.mxu0 0.0
        %1834 = vmatprep.mubr.f32.mxu0 0.0
        %1835 = vmatmul.mubr.f32.gmra.mxu0 %v1768
        %v1836 = vpop.f32.mrf.mxu0
        %v1837 = vadd.f32 %v1751, %v1836
        %v1838 = vpop.f32.mrf.mxu0
        %1839 = vdwg.mxu0
        %v1840 = vmax.f32 %v1837, 0.0
        %v1841 = vld [vmem:[%s11] sm:$0xff]
        %v1842 = vld [vmem:[%s11 + $0x8] sm:$0xff]
        %v1843 = vld [vmem:[%s11 + $0x10] sm:$0xff]
        %v1844 = vld [vmem:[%s11 + $0x18] sm:$0xff]
        %v1845 = vld [vmem:[%s12] sm:$0x1]
        %v1847 = vlaneseq
        %v1848 = vshrl.u32 %v1847, 7
        %v1849 = vsub.s32 0, %v1848
        %v1850 = vrot.slane %v1845, %v1849
        %v1853 = vsel %vm846, %v1840, 0
        %1855 = vmatprep.subr.mxu0 0.0
        %1856 = vmatpush1.msra.mxu0 0.0
        %1857 = vmatprep.subr.mxu0 0.0
        %1858 = vmatpush1.msra.mxu0 0.0
        %1859 = vmatprep.subr.mxu0 0.0
        %1860 = vmatpush1.msra.mxu0 0.0
        %1861 = vmatprep.subr.mxu0 0.0
        %1862 = vmatpush1.msra.mxu0 0.0
        %1863 = vmatprep.subr.mxu0 0.0
        %1864 = vmatpush1.msra.mxu0 0.0
        %1865 = vmatprep.subr.mxu0 0.0
        %1866 = vmatpush1.msra.mxu0 0.0
        %1867 = vmatprep.subr.mxu0 0.0
        %1868 = vmatpush1.msra.mxu0 0.0
        %1869 = vmatprep.subr.mxu0 0.0
        %1870 = vmatpush1.msra.mxu0 0.0
        %1871 = vmatprep.subr.mxu0 0.0
        %1872 = vmatpush1.msra.mxu0 0.0
        %1873 = vmatprep.subr.mxu0 0.0
        %1874 = vmatpush1.msra.mxu0 0.0
        %1875 = vmatprep.subr.mxu0 0.0
        %1876 = vmatpush1.msra.mxu0 0.0
        %1877 = vmatprep.subr.mxu0 0.0
        %1878 = vmatpush1.msra.mxu0 0.0
        %1879 = vmatprep.subr.mxu0 0.0
        %1880 = vmatpush1.msra.mxu0 %v1844
        %1881 = vmatprep.subr.mxu0 0.0
        %1882 = vmatpush1.msra.mxu0 %v1843
        %1883 = vmatprep.subr.mxu0 0.0
        %1884 = vmatpush1.msra.mxu0 %v1842
        %1885 = vmatprep.subr.mxu0 0.0
        %1886 = vmatpush1.msra.mxu0 %v1841
        %1887 = vmatprep.subr.mxu0 0.0
        %1888 = vmatpush2.msra.mxu0 0.0
        %1889 = vmatprep.subr.mxu0 0.0
        %1890 = vmatpush2.msra.mxu0 0.0
        %1891 = vmatprep.subr.mxu0 0.0
        %1892 = vmatpush2.msra.mxu0 0.0
        %1893 = vmatprep.subr.mxu0 0.0
        %1894 = vmatpush2.msra.mxu0 0.0
        %1895 = vmatprep.subr.mxu0 0.0
        %1896 = vmatpush2.msra.mxu0 0.0
        %1897 = vmatprep.subr.mxu0 0.0
        %1898 = vmatpush2.msra.mxu0 0.0
        %1899 = vmatprep.subr.mxu0 0.0
        %1900 = vmatpush2.msra.mxu0 0.0
        %1901 = vmatprep.subr.mxu0 0.0
        %1902 = vmatpush2.msra.mxu0 0.0
        %1903 = vmatprep.subr.mxu0 0.0
        %1904 = vmatpush2.msra.mxu0 0.0
        %1905 = vmatprep.subr.mxu0 0.0
        %1906 = vmatpush2.msra.mxu0 0.0
        %1907 = vmatprep.subr.mxu0 0.0
        %1908 = vmatpush2.msra.mxu0 0.0
        %1909 = vmatprep.subr.mxu0 0.0
        %1910 = vmatpush2.msra.mxu0 0.0
        %1911 = vmatprep.subr.mxu0 0.0
        %1912 = vmatpush2.msra.mxu0 0.0
        %1913 = vmatprep.subr.mxu0 0.0
        %1914 = vmatpush2.msra.mxu0 0.0
        %1915 = vmatprep.subr.mxu0 0.0
        %1916 = vmatpush2.msra.mxu0 0.0
        %1917 = vmatprep.subr.mxu0 0.0
        %1918 = vmatpush2.msra.mxu0 0.0
        %1919 = vmatprep.mubr.f32.mxu0 0.0
        %1920 = vmatmul.mubr.f32.gmra.mxu0 %v1853
        %v1921 = vpop.f32.mrf.mxu0
        %v1922 = vadd.f32 %v1850, %v1921
        %v1923 = vpop.f32.mrf.mxu0
        %1924 = vdwg.mxu0
        %v1925 = vmul.f32 %v1922, %v1741
        %vm1926 = vcmask 523264
        %1927 = vst.msk [vmem:[%s434] sm:$0xff] %vm1926, %v1925
        %s1928 = sand.u32 %s313, 1
        %s1929 = scalar_lea.sflag [#allocation3], %s1928
        %s1930 = sand.u32 %s313, 1
        %s1931 = smul.addr %s1930, 8
        %s1932 = scalar_lea.vmem [#allocation2], %s1931
        // Predicated region
        $region73: #{pointnet_polyline_encoder.1} parent=71 // pred_check
          %p1933 = pneg %p323
        $region74: #{pointnet_polyline_encoder.1} parent=71 // pred_check_branch
          %1935 = sbr.rel (%p1933) target = $region76
        $region75: #{pointnet_polyline_encoder.1} parent=71 // pred_region
          %s1937 = ssub.s32 128, 128
          %1938 = vsyncadd %s1929, %s1937
          %s1939 = smul.addr %s27, 128
          %s1940 = scalar_lea.hbm %s13, %s1939
          %s1942 = sshll.u32 %s1932, 4
          %s1943 = int_to_ptr.vmem [resolvable:$true] %s1942
          %1945 = dma.vmem_to_hbm [thread:$0]  %s1943, 128, %s1940, %s1929
        $region76: #{pointnet_polyline_encoder.1} parent=71 // pred_fallthru
          _
      $region72: #{pointnet_polyline_encoder.1} parent=5 // pred_fallthru
        _
      %p1946 = scmp.le.s32.totalorder 2, %s22
      // Predicated region
      $region77: #{pointnet_polyline_encoder.1} parent=5 // pred_check
        %p1947 = pneg %p1946
      $region78: #{pointnet_polyline_encoder.1} parent=5 // pred_check_branch
        %1949 = sbr.rel (%p1947) target = $region80
      $region79: #{pointnet_polyline_encoder.1} parent=5 // pred_region
        %s1950 = ssub.s32 %s22, 2
        // Predicated region
        $region81: #{pointnet_polyline_encoder.1} parent=79 // pred_check
          %p1951 = pneg %p329
        $region82: #{pointnet_polyline_encoder.1} parent=79 // pred_check_branch
          %1953 = sbr.rel (%p1951) target = $region84
        $region83: #{pointnet_polyline_encoder.1} parent=79 // pred_region
          %s1954 = sand.u32 %s314, 1
          %s1955 = scalar_lea.sflag [#allocation3], %s1954
          %s1956 = sand.u32 %s314, 1
          %s1957 = smul.addr %s1956, 8
          %s1958 = scalar_lea.vmem [#allocation2], %s1957
          %1959 = dma.done %s1955, 128
        $region84: #{pointnet_polyline_encoder.1} parent=79 // pred_fallthru
          _
      $region80: #{pointnet_polyline_encoder.1} parent=5 // pred_fallthru
        _
    $region6: #{pointnet_polyline_encoder.1} parent=1 // loop_footer
      %s26 = sadd.s32 1, %s22
    $region7: #{pointnet_polyline_encoder.1} parent=1 // loop_footer_branch
      %21 = sbr.rel target = $region3
    $region8: #{pointnet_polyline_encoder.1} parent=1 // loop_exit
      _
    %1960 = vsyncpa [#allocation3], 1
    %s1961 = scalar_lea.sflag [#allocation3], 1
    %1962 = vsyncpa %s1961, 1

</llo_original>
